<compile_context>
chip_gen: v6e
topology: v6e:2x2x1
jax: 0.10.0
libtpu: 0.0.40
codegen_flags: <defaults>
</compile_context>

<pallas_src>
import jax
import jax.numpy as jnp
from jax.experimental import pallas as pl
from jax.experimental.pallas import tpu as pltpu

# ---- config (stands in for ./config.json) ----------------------------------
config = {
    "d_model": 32,
    "block_length": 8,
    "groups": 2,
    "heads": 4,
    "attention": "GQA",      # "MHA" or anything-else -> GroupedQueryAttention
    "activation": "SwiGLU",  # "ReLU" or anything-else -> FeedForwardSwiGLU
}

LN_EPS = 1e-5


def make_transformer_block(cfg, B, T, C, dtype=jnp.float32):
    H = cfg["heads"]
    use_mha = cfg["attention"] == "MHA"
    G = H if use_mha else cfg["groups"]          # MHA == GQA with groups=heads
    D = C // H
    h2g = H // G
    HD, GD = H * D, G * D
    use_swiglu = cfg["activation"] != "ReLU"
    hidden = int(4 * C * (2.0 / 3.0)) if use_swiglu else 4 * C
    # Pad FFN hidden dim up to a multiple of 128 lanes (zero cols/rows -> same
    # numerics) so the biggest matmuls run on dense tiles with unmasked stores.
    Hp = ((hidden + 127) // 128) * 128
    scale = D ** (-0.5)

    def _layernorm(h, gamma, beta):
        mu = jnp.mean(h, axis=-1, keepdims=True)
        var = jnp.mean((h - mu) ** 2, axis=-1, keepdims=True)
        return (h - mu) * jax.lax.rsqrt(var + LN_EPS) * gamma + beta

    def kernel(x_ref, g1_ref, b1_ref, g2_ref, b2_ref,
               wqkv_ref, wff_ref, w2_ref, o_ref):
        # Whole batch in one step: (B, T, C) -> (B*T, C)
        x = x_ref[...].astype(jnp.float32)
        xf = x.reshape(B * T, C)

        # ------------- attention: LN1 + fused QKV + head-batched einsums ----
        h1 = _layernorm(xf, g1_ref[...], b1_ref[...])
        qkv = jnp.dot(h1, wqkv_ref[...], preferred_element_type=jnp.float32)
        q2 = qkv[:, :HD]                       # (B*T, H*D)
        k2 = qkv[:, HD:HD + GD]                # (B*T, G*D)
        v2 = qkv[:, HD + GD:]                  # (B*T, G*D)

        row = jax.lax.broadcasted_iota(jnp.int32, (T, T), 0)
        col = jax.lax.broadcasted_iota(jnp.int32, (T, T), 1)
        causal = (col <= row)[None, :, :]      # (1, T, T), diag unmasked

        outs = []
        for b in range(B):                     # tiny static loop over batch
            rows = slice(b * T, (b + 1) * T)
            qb = pltpu.einshape("thd->htd", q2[rows].reshape(T, H, D))
            kb = pltpu.einshape("tgd->gtd", k2[rows].reshape(T, G, D))
            vb = pltpu.einshape("tgd->gtd", v2[rows].reshape(T, G, D))
            if h2g > 1:                        # share K/V within each group
                kb = jnp.repeat(kb, h2g, axis=0)   # (H, T, D)
                vb = jnp.repeat(vb, h2g, axis=0)
            # contract last dims of both operands -> no explicit transpose
            s = jnp.einsum("htd,hsd->hts", qb, kb,
                           preferred_element_type=jnp.float32) * scale
            s = jnp.where(causal, s, -jnp.inf)
            e = jnp.exp(s - jnp.max(s, axis=-1, keepdims=True))
            p = e * pl.reciprocal(jnp.sum(e, axis=-1, keepdims=True),
                                  approx=True)
            ob = jnp.einsum("hts,hsd->htd", p, vb,
                            preferred_element_type=jnp.float32)  # (H, T, D)
            outs.append(pltpu.einshape("htd->thd", ob).reshape(T, C))
        attn = jnp.concatenate(outs, axis=0)   # (B*T, C)

        out1 = attn + xf                       # residual 1

        # ------------- feed-forward: LN2 + fused (W1 | V) + W2 --------------
        h2 = _layernorm(out1, g2_ref[...], b2_ref[...])
        proj = jnp.dot(h2, wff_ref[...], preferred_element_type=jnp.float32)
        if use_swiglu:
            a = proj[:, :Hp]                   # lane-aligned split at 128
            g = proj[:, Hp:]
            inner = a * jax.nn.sigmoid(a) * g  # SiLU(W1 x) * V x
        else:
            inner = jnp.maximum(proj, 0.0)     # ReLU
        ff = jnp.dot(inner, w2_ref[...], preferred_element_type=jnp.float32)

        o_ref[...] = (ff + out1).reshape(B, T, C).astype(o_ref.dtype)

    def forward(x, params):
        if use_swiglu:
            g1, b1, g2, b2, wq, wk, wv, w1, vg, w2 = params
        else:
            g1, b1, g2, b2, wq, wk, wv, w1, w2 = params
        # Fuse Q|K|V into a single matmul operand.
        wqkv = jnp.concatenate([wq, wk, wv], axis=1)        # (C, HD + 2*GD)
        pad = Hp - hidden
        w1p = jnp.pad(w1, ((0, 0), (0, pad)))
        w2p = jnp.pad(w2, ((0, pad), (0, 0)))
        if use_swiglu:
            wff = jnp.concatenate(
                [w1p, jnp.pad(vg, ((0, 0), (0, pad)))], axis=1)  # (C, 2*Hp)
        else:
            wff = w1p                                            # (C, Hp)
        # Note: at scale on v6e/v7x the matmul operands should be cast to bf16
        # (f32 accumulate); kept f32 here to match the f32 reference exactly.
        return pl.pallas_call(
            kernel,
            out_shape=jax.ShapeDtypeStruct((B, T, C), dtype),
        )(x, g1, b1, g2, b2, wqkv, wff, w2p)

    return forward, dict(H=H, G=G, D=D, hidden=hidden, hidden_padded=Hp,
                         use_swiglu=use_swiglu)


# ---------------- parameter init (deterministic, synthetic) -----------------
def init_params(cfg, C, key):
    H = cfg["heads"]
    use_mha = cfg["attention"] == "MHA"
    G = H if use_mha else cfg["groups"]
    D = C // H
    use_swiglu = cfg["activation"] != "ReLU"
    hidden = int(4 * C * (2.0 / 3.0)) if use_swiglu else 4 * C

    keys = jax.random.split(key, 8)
    std = 0.02
    g1 = jnp.ones((1, C), jnp.float32)
    b1 = jnp.zeros((1, C), jnp.float32)
    g2 = jnp.ones((1, C), jnp.float32)
    b2 = jnp.zeros((1, C), jnp.float32)
    wq = jax.random.normal(keys[0], (C, H * D), jnp.float32) * std     # (in,out)
    wk = jax.random.normal(keys[1], (C, G * D), jnp.float32) * std
    wv = jax.random.normal(keys[2], (C, G * D), jnp.float32) * std
    w1 = jax.random.normal(keys[3], (C, hidden), jnp.float32) * std
    w2 = jax.random.normal(keys[4], (hidden, C), jnp.float32) * std
    params = [g1, b1, g2, b2, wq, wk, wv, w1]
    if use_swiglu:
        vg = jax.random.normal(keys[5], (C, hidden), jnp.float32) * std
        params += [vg, w2]
    else:
        params += [w2]
    return params


# ---------------- pure-JAX reference (mirrors the PyTorch forward) ----------
def reference(cfg, x, params):
    C = cfg["d_model"]
    H = cfg["heads"]
    use_mha = cfg["attention"] == "MHA"
    G = H if use_mha else cfg["groups"]
    D = C // H
    use_swiglu = cfg["activation"] != "ReLU"
    if use_swiglu:
        g1, b1, g2, b2, wq, wk, wv, w1, vg, w2 = params
    else:
        g1, b1, g2, b2, wq, wk, wv, w1, w2 = params

    def ln(h, g, b):
        mu = h.mean(-1, keepdims=True)
        var = ((h - mu) ** 2).mean(-1, keepdims=True)
        return (h - mu) / jnp.sqrt(var + LN_EPS) * g[0] + b[0]

    B, T, _ = x.shape
    h1 = ln(x, g1, b1)
    q = h1 @ wq
    k = h1 @ wk
    v = h1 @ wv
    q = q.reshape(B, T, H, D).transpose(0, 2, 1, 3)
    k = k.reshape(B, T, G, D).transpose(0, 2, 1, 3)
    v = v.reshape(B, T, G, D).transpose(0, 2, 1, 3)
    h2g = H // G
    mask = jnp.tril(jnp.ones((T, T)))[None, None]
    outs = []
    for i in range(G):
        w = q[:, h2g * i:h2g * (i + 1)] @ jnp.swapaxes(k[:, i:i + 1], -2, -1)
        w = w * D ** (-0.5)
        w = jnp.where(mask == 0, -jnp.inf, w)
        w = jax.nn.softmax(w, axis=-1)
        outs.append(w @ v[:, i:i + 1])
    attn = jnp.concatenate(outs, axis=1)
    attn = attn.transpose(0, 2, 1, 3).reshape(B, T, C)
    out1 = attn + x

    h2 = ln(out1, g2, b2)
    a = h2 @ w1
    if use_swiglu:
        inner = jax.nn.silu(a) * (h2 @ vg)
    else:
        inner = jnp.maximum(a, 0.0)
    return inner @ w2 + out1


if __name__ == "__main__":
    B = 2
    T = config["block_length"]
    C = config["d_model"]

    key = jax.random.PRNGKey(0)
    k_x, k_p = jax.random.split(key)
    x = jax.random.normal(k_x, (B, T, C), jnp.float32)
    params = init_params(config, C, k_p)

    fwd, _info = make_transformer_block(config, B, T, C)
    out = fwd(x, params)
    out = jax.block_until_ready(out)

    ref = reference(config, x, params)
    assert out.shape == (B, T, C)
    # tolerance accounts for the approximate (EUP) reciprocal in softmax
    assert jnp.allclose(out, ref, atol=5e-4, rtol=5e-4), \
        f"max abs err {jnp.max(jnp.abs(out - ref))}"
    print("KERNEL_OK")
</pallas_src>

<mosaic_0001>
module attributes {stable_mosaic.version = 11 : i64} {
  func.func @kernel(%arg0: memref<2x8x32xf32, #tpu.memory_space<vmem>>, %arg1: memref<1x32xf32, #tpu.memory_space<vmem>>, %arg2: memref<1x32xf32, #tpu.memory_space<vmem>>, %arg3: memref<1x32xf32, #tpu.memory_space<vmem>>, %arg4: memref<1x32xf32, #tpu.memory_space<vmem>>, %arg5: memref<32x64xf32, #tpu.memory_space<vmem>>, %arg6: memref<32x256xf32, #tpu.memory_space<vmem>>, %arg7: memref<128x32xf32, #tpu.memory_space<vmem>>, %arg8: memref<2x8x32xf32, #tpu.memory_space<vmem>>) attributes {dimension_semantics = [], scalar_prefetch = 0 : i64, scratch_operands = 0 : i64, tpu.core_type = #tpu.core_type<tc>} {
    %c0 = arith.constant 0 : index
    %c0_0 = arith.constant 0 : index
    %c0_1 = arith.constant 0 : index
    %0 = vector.load %arg0[%c0, %c0_0, %c0_1] : memref<2x8x32xf32, #tpu.memory_space<vmem>>, vector<2x8x32xf32>
    %1 = vector.shape_cast %0 : vector<2x8x32xf32> to vector<16x32xf32>
    %c0_2 = arith.constant 0 : index
    %c0_3 = arith.constant 0 : index
    %2 = vector.load %arg1[%c0_2, %c0_3] : memref<1x32xf32, #tpu.memory_space<vmem>>, vector<1x32xf32>
    %c0_4 = arith.constant 0 : index
    %c0_5 = arith.constant 0 : index
    %3 = vector.load %arg2[%c0_4, %c0_5] : memref<1x32xf32, #tpu.memory_space<vmem>>, vector<1x32xf32>
    %cst = arith.constant dense<0.000000e+00> : vector<16xf32>
    %4 = vector.multi_reduction <add>, %1, %cst [1] : vector<16x32xf32> to vector<16xf32>
    %5 = vector.shape_cast %4 : vector<16xf32> to vector<16x1xf32>
    %cst_6 = arith.constant 3.200000e+01 : f32
    %6 = vector.broadcast %cst_6 : f32 to vector<16x1xf32>
    %7 = arith.divf %5, %6 : vector<16x1xf32>
    %8 = vector.broadcast %7 : vector<16x1xf32> to vector<16x32xf32>
    %9 = arith.subf %1, %8 : vector<16x32xf32>
    %10 = arith.mulf %9, %9 : vector<16x32xf32>
    %cst_7 = arith.constant dense<0.000000e+00> : vector<16xf32>
    %11 = vector.multi_reduction <add>, %10, %cst_7 [1] : vector<16x32xf32> to vector<16xf32>
    %12 = vector.shape_cast %11 : vector<16xf32> to vector<16x1xf32>
    %cst_8 = arith.constant 3.200000e+01 : f32
    %13 = vector.broadcast %cst_8 : f32 to vector<16x1xf32>
    %14 = arith.divf %12, %13 : vector<16x1xf32>
    %15 = vector.broadcast %7 : vector<16x1xf32> to vector<16x32xf32>
    %16 = arith.subf %1, %15 : vector<16x32xf32>
    %cst_9 = arith.constant 9.99999974E-6 : f32
    %17 = vector.broadcast %cst_9 : f32 to vector<16x1xf32>
    %18 = arith.addf %14, %17 : vector<16x1xf32>
    %19 = math.rsqrt %18 : vector<16x1xf32>
    %20 = vector.broadcast %19 : vector<16x1xf32> to vector<16x32xf32>
    %21 = arith.mulf %16, %20 : vector<16x32xf32>
    %22 = vector.broadcast %2 : vector<1x32xf32> to vector<16x32xf32>
    %23 = arith.mulf %21, %22 : vector<16x32xf32>
    %24 = vector.broadcast %3 : vector<1x32xf32> to vector<16x32xf32>
    %25 = arith.addf %23, %24 : vector<16x32xf32>
    %c0_10 = arith.constant 0 : index
    %c0_11 = arith.constant 0 : index
    %26 = vector.load %arg5[%c0_10, %c0_11] : memref<32x64xf32, #tpu.memory_space<vmem>>, vector<32x64xf32>
    %cst_12 = arith.constant dense<0.000000e+00> : vector<16x64xf32>
    %27 = tpu.matmul %25, %26, %cst_12 {dimension_numbers = #tpu.dot_dimension_numbers<[1], [0], [0], [1], [0, 0, 1, 1], [], []>} : vector<16x32xf32>, vector<32x64xf32>, vector<16x64xf32> -> vector<16x64xf32>
    %28 = vector.extract_strided_slice %27 {offsets = [0, 0], sizes = [16, 32], strides = [1, 1]} : vector<16x64xf32> to vector<16x32xf32>
    %29 = vector.extract_strided_slice %27 {offsets = [0, 32], sizes = [16, 16], strides = [1, 1]} : vector<16x64xf32> to vector<16x16xf32>
    %30 = vector.extract_strided_slice %27 {offsets = [0, 48], sizes = [16, 16], strides = [1, 1]} : vector<16x64xf32> to vector<16x16xf32>
    %31 = tpu.iota {dimensions = array<i32: 0>} : vector<8x8xi32>
    %32 = tpu.iota {dimensions = array<i32: 1>} : vector<8x8xi32>
    %33 = arith.cmpi sle, %32, %31 : vector<8x8xi32>
    %34 = vector.shape_cast %33 : vector<8x8xi1> to vector<1x8x8xi1>
    %35 = vector.extract_strided_slice %28 {offsets = [0, 0], sizes = [8, 32], strides = [1, 1]} : vector<16x32xf32> to vector<8x32xf32>
    %36 = vector.shape_cast %35 : vector<8x32xf32> to vector<8x4x8xf32>
    %37 = tpu.transpose %36, [1, 0, 2] : vector<8x4x8xf32> -> vector<4x8x8xf32>
    %38 = vector.extract_strided_slice %29 {offsets = [0, 0], sizes = [8, 16], strides = [1, 1]} : vector<16x16xf32> to vector<8x16xf32>
    %39 = vector.shape_cast %38 : vector<8x16xf32> to vector<8x2x8xf32>
    %40 = tpu.transpose %39, [1, 0, 2] : vector<8x2x8xf32> -> vector<2x8x8xf32>
    %41 = vector.extract_strided_slice %30 {offsets = [0, 0], sizes = [8, 16], strides = [1, 1]} : vector<16x16xf32> to vector<8x16xf32>
    %42 = vector.shape_cast %41 : vector<8x16xf32> to vector<8x2x8xf32>
    %43 = tpu.transpose %42, [1, 0, 2] : vector<8x2x8xf32> -> vector<2x8x8xf32>
    %44 = vector.shape_cast %40 : vector<2x8x8xf32> to vector<2x1x8x8xf32>
    %45 = vector.broadcast %44 : vector<2x1x8x8xf32> to vector<2x2x8x8xf32>
    %46 = vector.shape_cast %45 : vector<2x2x8x8xf32> to vector<4x8x8xf32>
    %47 = vector.shape_cast %43 : vector<2x8x8xf32> to vector<2x1x8x8xf32>
    %48 = vector.broadcast %47 : vector<2x1x8x8xf32> to vector<2x2x8x8xf32>
    %49 = vector.shape_cast %48 : vector<2x2x8x8xf32> to vector<4x8x8xf32>
    "tpu.trace_start"() <{level = 10 : i32, message = "htd,hsd->hts"}> : () -> ()
    %cst_13 = arith.constant dense<0.000000e+00> : vector<4x8x8xf32>
    %50 = tpu.matmul %37, %46, %cst_13 {dimension_numbers = #tpu.dot_dimension_numbers<[2], [2], [1], [1], [0, 0, 0, 1, 1, 1], [0], [0]>} : vector<4x8x8xf32>, vector<4x8x8xf32>, vector<4x8x8xf32> -> vector<4x8x8xf32>
    "tpu.trace_stop"() : () -> ()
    %cst_14 = arith.constant 0.353553385 : f32
    %51 = vector.broadcast %cst_14 : f32 to vector<4x8x8xf32>
    %52 = arith.mulf %50, %51 : vector<4x8x8xf32>
    %cst_15 = arith.constant 0xFF800000 : f32
    %53 = vector.shape_cast %34 : vector<1x8x8xi1> to vector<1x8x8xi1>
    %54 = vector.broadcast %53 : vector<1x8x8xi1> to vector<4x8x8xi1>
    %55 = vector.broadcast %cst_15 : f32 to vector<4x8x8xf32>
    %56 = arith.select %54, %52, %55 : vector<4x8x8xi1>, vector<4x8x8xf32>
    %cst_16 = arith.constant dense<0xFF800000> : vector<4x8xf32>
    %57 = vector.multi_reduction <maximumf>, %56, %cst_16 [2] : vector<4x8x8xf32> to vector<4x8xf32>
    %58 = vector.shape_cast %57 : vector<4x8xf32> to vector<4x8x1xf32>
    %59 = vector.broadcast %58 : vector<4x8x1xf32> to vector<4x8x8xf32>
    %60 = arith.subf %56, %59 : vector<4x8x8xf32>
    %61 = math.exp %60 : vector<4x8x8xf32>
    %cst_17 = arith.constant dense<0.000000e+00> : vector<4x8xf32>
    %62 = vector.multi_reduction <add>, %61, %cst_17 [2] : vector<4x8x8xf32> to vector<4x8xf32>
    %63 = vector.shape_cast %62 : vector<4x8xf32> to vector<4x8x1xf32>
    %64 = tpu.reciprocal %63 {approx = true} : vector<4x8x1xf32> -> vector<4x8x1xf32>
    %65 = vector.broadcast %64 : vector<4x8x1xf32> to vector<4x8x8xf32>
    %66 = arith.mulf %61, %65 : vector<4x8x8xf32>
    "tpu.trace_start"() <{level = 10 : i32, message = "hts,hsd->htd"}> : () -> ()
    %cst_18 = arith.constant dense<0.000000e+00> : vector<4x8x8xf32>
    %67 = tpu.matmul %66, %49, %cst_18 {dimension_numbers = #tpu.dot_dimension_numbers<[2], [1], [1], [2], [0, 0, 0, 1, 1, 2], [0], [0]>} : vector<4x8x8xf32>, vector<4x8x8xf32>, vector<4x8x8xf32> -> vector<4x8x8xf32>
    "tpu.trace_stop"() : () -> ()
    %68 = tpu.transpose %67, [1, 0, 2] : vector<4x8x8xf32> -> vector<8x4x8xf32>
    %69 = vector.shape_cast %68 : vector<8x4x8xf32> to vector<8x32xf32>
    %70 = vector.extract_strided_slice %28 {offsets = [8, 0], sizes = [8, 32], strides = [1, 1]} : vector<16x32xf32> to vector<8x32xf32>
    %71 = vector.shape_cast %70 : vector<8x32xf32> to vector<8x4x8xf32>
    %72 = tpu.transpose %71, [1, 0, 2] : vector<8x4x8xf32> -> vector<4x8x8xf32>
    %73 = vector.extract_strided_slice %29 {offsets = [8, 0], sizes = [8, 16], strides = [1, 1]} : vector<16x16xf32> to vector<8x16xf32>
    %74 = vector.shape_cast %73 : vector<8x16xf32> to vector<8x2x8xf32>
    %75 = tpu.transpose %74, [1, 0, 2] : vector<8x2x8xf32> -> vector<2x8x8xf32>
    %76 = vector.extract_strided_slice %30 {offsets = [8, 0], sizes = [8, 16], strides = [1, 1]} : vector<16x16xf32> to vector<8x16xf32>
    %77 = vector.shape_cast %76 : vector<8x16xf32> to vector<8x2x8xf32>
    %78 = tpu.transpose %77, [1, 0, 2] : vector<8x2x8xf32> -> vector<2x8x8xf32>
    %79 = vector.shape_cast %75 : vector<2x8x8xf32> to vector<2x1x8x8xf32>
    %80 = vector.broadcast %79 : vector<2x1x8x8xf32> to vector<2x2x8x8xf32>
    %81 = vector.shape_cast %80 : vector<2x2x8x8xf32> to vector<4x8x8xf32>
    %82 = vector.shape_cast %78 : vector<2x8x8xf32> to vector<2x1x8x8xf32>
    %83 = vector.broadcast %82 : vector<2x1x8x8xf32> to vector<2x2x8x8xf32>
    %84 = vector.shape_cast %83 : vector<2x2x8x8xf32> to vector<4x8x8xf32>
    "tpu.trace_start"() <{level = 10 : i32, message = "htd,hsd->hts"}> : () -> ()
    %cst_19 = arith.constant dense<0.000000e+00> : vector<4x8x8xf32>
    %85 = tpu.matmul %72, %81, %cst_19 {dimension_numbers = #tpu.dot_dimension_numbers<[2], [2], [1], [1], [0, 0, 0, 1, 1, 1], [0], [0]>} : vector<4x8x8xf32>, vector<4x8x8xf32>, vector<4x8x8xf32> -> vector<4x8x8xf32>
    "tpu.trace_stop"() : () -> ()
    %cst_20 = arith.constant 0.353553385 : f32
    %86 = vector.broadcast %cst_20 : f32 to vector<4x8x8xf32>
    %87 = arith.mulf %85, %86 : vector<4x8x8xf32>
    %cst_21 = arith.constant 0xFF800000 : f32
    %88 = vector.shape_cast %34 : vector<1x8x8xi1> to vector<1x8x8xi1>
    %89 = vector.broadcast %88 : vector<1x8x8xi1> to vector<4x8x8xi1>
    %90 = vector.broadcast %cst_21 : f32 to vector<4x8x8xf32>
    %91 = arith.select %89, %87, %90 : vector<4x8x8xi1>, vector<4x8x8xf32>
    %cst_22 = arith.constant dense<0xFF800000> : vector<4x8xf32>
    %92 = vector.multi_reduction <maximumf>, %91, %cst_22 [2] : vector<4x8x8xf32> to vector<4x8xf32>
    %93 = vector.shape_cast %92 : vector<4x8xf32> to vector<4x8x1xf32>
    %94 = vector.broadcast %93 : vector<4x8x1xf32> to vector<4x8x8xf32>
    %95 = arith.subf %91, %94 : vector<4x8x8xf32>
    %96 = math.exp %95 : vector<4x8x8xf32>
    %cst_23 = arith.constant dense<0.000000e+00> : vector<4x8xf32>
    %97 = vector.multi_reduction <add>, %96, %cst_23 [2] : vector<4x8x8xf32> to vector<4x8xf32>
    %98 = vector.shape_cast %97 : vector<4x8xf32> to vector<4x8x1xf32>
    %99 = tpu.reciprocal %98 {approx = true} : vector<4x8x1xf32> -> vector<4x8x1xf32>
    %100 = vector.broadcast %99 : vector<4x8x1xf32> to vector<4x8x8xf32>
    %101 = arith.mulf %96, %100 : vector<4x8x8xf32>
    "tpu.trace_start"() <{level = 10 : i32, message = "hts,hsd->htd"}> : () -> ()
    %cst_24 = arith.constant dense<0.000000e+00> : vector<4x8x8xf32>
    %102 = tpu.matmul %101, %84, %cst_24 {dimension_numbers = #tpu.dot_dimension_numbers<[2], [1], [1], [2], [0, 0, 0, 1, 1, 2], [0], [0]>} : vector<4x8x8xf32>, vector<4x8x8xf32>, vector<4x8x8xf32> -> vector<4x8x8xf32>
    "tpu.trace_stop"() : () -> ()
    %103 = tpu.transpose %102, [1, 0, 2] : vector<4x8x8xf32> -> vector<8x4x8xf32>
    %104 = vector.shape_cast %103 : vector<8x4x8xf32> to vector<8x32xf32>
    %105 = tpu.concatenate %69, %104 in 0 : vector<8x32xf32>, vector<8x32xf32> -> vector<16x32xf32>
    %106 = arith.addf %105, %1 : vector<16x32xf32>
    %c0_25 = arith.constant 0 : index
    %c0_26 = arith.constant 0 : index
    %107 = vector.load %arg3[%c0_25, %c0_26] : memref<1x32xf32, #tpu.memory_space<vmem>>, vector<1x32xf32>
    %c0_27 = arith.constant 0 : index
    %c0_28 = arith.constant 0 : index
    %108 = vector.load %arg4[%c0_27, %c0_28] : memref<1x32xf32, #tpu.memory_space<vmem>>, vector<1x32xf32>
    %cst_29 = arith.constant dense<0.000000e+00> : vector<16xf32>
    %109 = vector.multi_reduction <add>, %106, %cst_29 [1] : vector<16x32xf32> to vector<16xf32>
    %110 = vector.shape_cast %109 : vector<16xf32> to vector<16x1xf32>
    %cst_30 = arith.constant 3.200000e+01 : f32
    %111 = vector.broadcast %cst_30 : f32 to vector<16x1xf32>
    %112 = arith.divf %110, %111 : vector<16x1xf32>
    %113 = vector.broadcast %112 : vector<16x1xf32> to vector<16x32xf32>
    %114 = arith.subf %106, %113 : vector<16x32xf32>
    %115 = arith.mulf %114, %114 : vector<16x32xf32>
    %cst_31 = arith.constant dense<0.000000e+00> : vector<16xf32>
    %116 = vector.multi_reduction <add>, %115, %cst_31 [1] : vector<16x32xf32> to vector<16xf32>
    %117 = vector.shape_cast %116 : vector<16xf32> to vector<16x1xf32>
    %cst_32 = arith.constant 3.200000e+01 : f32
    %118 = vector.broadcast %cst_32 : f32 to vector<16x1xf32>
    %119 = arith.divf %117, %118 : vector<16x1xf32>
    %120 = vector.broadcast %112 : vector<16x1xf32> to vector<16x32xf32>
    %121 = arith.subf %106, %120 : vector<16x32xf32>
    %cst_33 = arith.constant 9.99999974E-6 : f32
    %122 = vector.broadcast %cst_33 : f32 to vector<16x1xf32>
    %123 = arith.addf %119, %122 : vector<16x1xf32>
    %124 = math.rsqrt %123 : vector<16x1xf32>
    %125 = vector.broadcast %124 : vector<16x1xf32> to vector<16x32xf32>
    %126 = arith.mulf %121, %125 : vector<16x32xf32>
    %127 = vector.broadcast %107 : vector<1x32xf32> to vector<16x32xf32>
    %128 = arith.mulf %126, %127 : vector<16x32xf32>
    %129 = vector.broadcast %108 : vector<1x32xf32> to vector<16x32xf32>
    %130 = arith.addf %128, %129 : vector<16x32xf32>
    %c0_34 = arith.constant 0 : index
    %c0_35 = arith.constant 0 : index
    %131 = vector.load %arg6[%c0_34, %c0_35] : memref<32x256xf32, #tpu.memory_space<vmem>>, vector<32x256xf32>
    %cst_36 = arith.constant dense<0.000000e+00> : vector<16x256xf32>
    %132 = tpu.matmul %130, %131, %cst_36 {dimension_numbers = #tpu.dot_dimension_numbers<[1], [0], [0], [1], [0, 0, 1, 1], [], []>} : vector<16x32xf32>, vector<32x256xf32>, vector<16x256xf32> -> vector<16x256xf32>
    %133 = vector.extract_strided_slice %132 {offsets = [0, 0], sizes = [16, 128], strides = [1, 1]} : vector<16x256xf32> to vector<16x128xf32>
    %134 = vector.extract_strided_slice %132 {offsets = [0, 128], sizes = [16, 128], strides = [1, 1]} : vector<16x256xf32> to vector<16x128xf32>
    %135 = arith.negf %133 : vector<16x128xf32>
    %136 = math.exp %135 : vector<16x128xf32>
    %cst_37 = arith.constant 1.000000e+00 : f32
    %137 = vector.broadcast %cst_37 : f32 to vector<16x128xf32>
    %138 = arith.addf %137, %136 : vector<16x128xf32>
    %139 = arith.divf %137, %138 : vector<16x128xf32>
    %140 = arith.mulf %133, %139 : vector<16x128xf32>
    %141 = arith.mulf %140, %134 : vector<16x128xf32>
    %c0_38 = arith.constant 0 : index
    %c0_39 = arith.constant 0 : index
    %142 = vector.load %arg7[%c0_38, %c0_39] : memref<128x32xf32, #tpu.memory_space<vmem>>, vector<128x32xf32>
    %cst_40 = arith.constant dense<0.000000e+00> : vector<16x32xf32>
    %143 = tpu.matmul %141, %142, %cst_40 {dimension_numbers = #tpu.dot_dimension_numbers<[1], [0], [0], [1], [0, 0, 1, 1], [], []>} : vector<16x128xf32>, vector<128x32xf32>, vector<16x32xf32> -> vector<16x32xf32>
    %144 = arith.addf %143, %106 : vector<16x32xf32>
    %145 = vector.shape_cast %144 : vector<16x32xf32> to vector<2x8x32xf32>
    %c0_41 = arith.constant 0 : index
    %c0_42 = arith.constant 0 : index
    %c0_43 = arith.constant 0 : index
    %146 = vector.load %arg8[%c0_41, %c0_42, %c0_43] : memref<2x8x32xf32, #tpu.memory_space<vmem>>, vector<2x8x32xf32>
    tpu.vector_store %arg8[%c0_41, %c0_42, %c0_43], %145 {strides = array<i32>} : memref<2x8x32xf32, #tpu.memory_space<vmem>>, vector<2x8x32xf32>,
    return
  }
}

</mosaic_0001>

<llo_original>
// kernel: tpu_custom_call.1
$region0: #{tpu_custom_call.1}
  #allocation0 [shape = 'u32[]', space=smem, size = 0x4, offset = 0x4, fixed_abs, tag = 'smem constant byte address 0x4 - core index']
  #allocation1 [shape = 'u32[144,128]{1,0:T(1,128)}', space=vmem, size = 0x12000, scoped, tag = 'internal scratch']
  %s0 = inlined_call_operand.vmem [shape: f32[2,8,32], index: 0, kind: input, shape index: {}]
  %s1 = inlined_call_operand.vmem [shape: f32[1,32], index: 1, kind: input, shape index: {}]
  %s2 = inlined_call_operand.vmem [shape: f32[1,32], index: 2, kind: input, shape index: {}]
  %s3 = inlined_call_operand.vmem [shape: f32[1,32], index: 3, kind: input, shape index: {}]
  %s4 = inlined_call_operand.vmem [shape: f32[1,32], index: 4, kind: input, shape index: {}]
  %s5 = inlined_call_operand.vmem [shape: f32[32,64], index: 5, kind: input, shape index: {}]
  %s6 = inlined_call_operand.vmem [shape: f32[32,256], index: 6, kind: input, shape index: {}]
  %s7 = inlined_call_operand.vmem [shape: f32[128,32], index: 7, kind: input, shape index: {}]
  %s8 = inlined_call_operand.hbm [shape: f32[2,8,32], index: 8, kind: output, shape index: {}]
  %s9 = sld [smem:[#allocation0]]
  $region42: #{tpu_custom_call.1} parent=0
    _
  %s11 = ssub.s32 1, %s9
  %s12 = scalar_select 0, %s11, %s9
  $region1: #{tpu_custom_call.1} parent=0
    #allocation2 [shape = 'u8[8192]{0}', space=vmem, size = 0x2000, scoped, tag = 'output window, operand 0, single buffered']
    #allocation3 [shape = 's32[1]{0}', space=sflag, size = 0x4, scoped, tag = 'scoped memory for tpu_custom_call.1']
    %13 = vsyncpa [#allocation3], 0
    // Predicated region
    $region2: #{tpu_custom_call.1} parent=1 // pred_check
      _
    $region3: #{tpu_custom_call.1} parent=1 // pred_check_branch
      %15 = sbr.rel (0) target = $region5
    $region4: #{tpu_custom_call.1} parent=1 // pred_region
      _
    $region5: #{tpu_custom_call.1} parent=1 // pred_fallthru
      _
    // Predicated region
    $region6: #{tpu_custom_call.1} parent=1 // pred_check
      _
    $region7: #{tpu_custom_call.1} parent=1 // pred_check_branch
      %17 = sbr.rel (0) target = $region9
    $region8: #{tpu_custom_call.1} parent=1 // pred_region
      _
    $region9: #{tpu_custom_call.1} parent=1 // pred_fallthru
      _
    // Predicated region
    $region10: #{tpu_custom_call.1} parent=1 // pred_check
      _
    $region11: #{tpu_custom_call.1} parent=1 // pred_check_branch
      %19 = sbr.rel (0) target = $region13
    $region12: #{tpu_custom_call.1} parent=1 // pred_region
      _
    $region13: #{tpu_custom_call.1} parent=1 // pred_fallthru
      _
    // Predicated region
    $region14: #{tpu_custom_call.1} parent=1 // pred_check
      _
    $region15: #{tpu_custom_call.1} parent=1 // pred_check_branch
      %21 = sbr.rel (0) target = $region17
    $region16: #{tpu_custom_call.1} parent=1 // pred_region
      _
    $region17: #{tpu_custom_call.1} parent=1 // pred_fallthru
      _
    // Predicated region
    $region18: #{tpu_custom_call.1} parent=1 // pred_check
      _
    $region19: #{tpu_custom_call.1} parent=1 // pred_check_branch
      %23 = sbr.rel (0) target = $region21
    $region20: #{tpu_custom_call.1} parent=1 // pred_region
      _
    $region21: #{tpu_custom_call.1} parent=1 // pred_fallthru
      _
    // Predicated region
    $region22: #{tpu_custom_call.1} parent=1 // pred_check
      _
    $region23: #{tpu_custom_call.1} parent=1 // pred_check_branch
      %25 = sbr.rel (0) target = $region25
    $region24: #{tpu_custom_call.1} parent=1 // pred_region
      _
    $region25: #{tpu_custom_call.1} parent=1 // pred_fallthru
      _
    // Predicated region
    $region26: #{tpu_custom_call.1} parent=1 // pred_check
      _
    $region27: #{tpu_custom_call.1} parent=1 // pred_check_branch
      %27 = sbr.rel (0) target = $region29
    $region28: #{tpu_custom_call.1} parent=1 // pred_region
      _
    $region29: #{tpu_custom_call.1} parent=1 // pred_fallthru
      _
    // Predicated region
    $region30: #{tpu_custom_call.1} parent=1 // pred_check
      _
    $region31: #{tpu_custom_call.1} parent=1 // pred_check_branch
      %29 = sbr.rel (0) target = $region33
    $region32: #{tpu_custom_call.1} parent=1 // pred_region
      _
    $region33: #{tpu_custom_call.1} parent=1 // pred_fallthru
      _
    %v30 = vld [vmem:[%s0] sm:$0xff]
    %v31 = vld [vmem:[%s0 + $0x8] sm:$0xff]
    %v32 = vld [vmem:[%s1] sm:$0x1]
    %v33 = vld [vmem:[%s2] sm:$0x1]
    %vm34 = vcmask 261120
    %v35 = vsel %vm34, %v30, 0.0
    %36 = vadd.xlane.f32.xlu0 %v35
    %v37 = vpop.xlane.xlu0 %36
    %v38 = vsel %vm34, %v31, 0.0
    %39 = vadd.xlane.f32.xlu0 %v38
    %v40 = vpop.xlane.xlu0 %39
    %v41 = vrcp.pop 32.0
    %v42 = vmul.f32 %v37, %v41
    %v43 = vmul.f32 %v40, %v41
    %v44 = vsub.f32 %v30, %v42
    %v45 = vsub.f32 %v31, %v43
    %v46 = vmul.f32 %v44, %v44
    %v47 = vmul.f32 %v45, %v45
    %v48 = vsel %vm34, %v46, 0.0
    %49 = vadd.xlane.f32.xlu0 %v48
    %v50 = vpop.xlane.xlu0 %49
    %v51 = vsel %vm34, %v47, 0.0
    %52 = vadd.xlane.f32.xlu0 %v51
    %v53 = vpop.xlane.xlu0 %52
    %v54 = vmul.f32 %v50, %v41
    %v55 = vmul.f32 %v53, %v41
    %v56 = vadd.f32 %v54, 1e-05
    %v57 = vadd.f32 %v55, 1e-05
    %v58 = vrsqrt.pop %v56
    %v59 = vrsqrt.pop %v57
    %v60 = vmul.f32 %v44, %v58
    %v61 = vmul.f32 %v45, %v59
    %v63 = vlaneseq
    %v64 = vshrl.u32 %v63, 7
    %v65 = vsub.s32 0, %v64
    %v66 = vrot.slane %v32, %v65
    %v68 = vmul.f32 %v60, %v66
    %v69 = vmul.f32 %v61, %v66
    %v71 = vlaneseq
    %v72 = vshrl.u32 %v71, 7
    %v73 = vsub.s32 0, %v72
    %v74 = vrot.slane %v33, %v73
    %v76 = vadd.f32 %v68, %v74
    %v77 = vadd.f32 %v69, %v74
    %v78 = vld [vmem:[%s5] sm:$0xff]
    %v79 = vld [vmem:[%s5 + $0x8] sm:$0xff]
    %v80 = vld [vmem:[%s5 + $0x10] sm:$0xff]
    %v81 = vld [vmem:[%s5 + $0x18] sm:$0xff]
    %v83 = vsel %vm34, %v76, 0
    %v86 = vsel %vm34, %v77, 0
    %88 = vmatprep.subr.mxu0 0.0
    %89 = vmatpush1.msra.mxu0 0.0
    %90 = vmatprep.subr.mxu0 0.0
    %91 = vmatpush1.msra.mxu0 0.0
    %92 = vmatprep.subr.mxu0 0.0
    %93 = vmatpush1.msra.mxu0 0.0
    %94 = vmatprep.subr.mxu0 0.0
    %95 = vmatpush1.msra.mxu0 0.0
    %96 = vmatprep.subr.mxu0 0.0
    %97 = vmatpush1.msra.mxu0 0.0
    %98 = vmatprep.subr.mxu0 0.0
    %99 = vmatpush1.msra.mxu0 0.0
    %100 = vmatprep.subr.mxu0 0.0
    %101 = vmatpush1.msra.mxu0 0.0
    %102 = vmatprep.subr.mxu0 0.0
    %103 = vmatpush1.msra.mxu0 0.0
    %104 = vmatprep.subr.mxu0 0.0
    %105 = vmatpush1.msra.mxu0 0.0
    %106 = vmatprep.subr.mxu0 0.0
    %107 = vmatpush1.msra.mxu0 0.0
    %108 = vmatprep.subr.mxu0 0.0
    %109 = vmatpush1.msra.mxu0 0.0
    %110 = vmatprep.subr.mxu0 0.0
    %111 = vmatpush1.msra.mxu0 0.0
    %112 = vmatprep.subr.mxu0 0.0
    %113 = vmatpush1.msra.mxu0 %v81
    %114 = vmatprep.subr.mxu0 0.0
    %115 = vmatpush1.msra.mxu0 %v80
    %116 = vmatprep.subr.mxu0 0.0
    %117 = vmatpush1.msra.mxu0 %v79
    %118 = vmatprep.subr.mxu0 0.0
    %119 = vmatpush1.msra.mxu0 %v78
    %120 = vmatprep.subr.mxu0 0.0
    %121 = vmatpush2.msra.mxu0 0.0
    %122 = vmatprep.subr.mxu0 0.0
    %123 = vmatpush2.msra.mxu0 0.0
    %124 = vmatprep.subr.mxu0 0.0
    %125 = vmatpush2.msra.mxu0 0.0
    %126 = vmatprep.subr.mxu0 0.0
    %127 = vmatpush2.msra.mxu0 0.0
    %128 = vmatprep.subr.mxu0 0.0
    %129 = vmatpush2.msra.mxu0 0.0
    %130 = vmatprep.subr.mxu0 0.0
    %131 = vmatpush2.msra.mxu0 0.0
    %132 = vmatprep.subr.mxu0 0.0
    %133 = vmatpush2.msra.mxu0 0.0
    %134 = vmatprep.subr.mxu0 0.0
    %135 = vmatpush2.msra.mxu0 0.0
    %136 = vmatprep.subr.mxu0 0.0
    %137 = vmatpush2.msra.mxu0 0.0
    %138 = vmatprep.subr.mxu0 0.0
    %139 = vmatpush2.msra.mxu0 0.0
    %140 = vmatprep.subr.mxu0 0.0
    %141 = vmatpush2.msra.mxu0 0.0
    %142 = vmatprep.subr.mxu0 0.0
    %143 = vmatpush2.msra.mxu0 0.0
    %144 = vmatprep.subr.mxu0 0.0
    %145 = vmatpush2.msra.mxu0 0.0
    %146 = vmatprep.subr.mxu0 0.0
    %147 = vmatpush2.msra.mxu0 0.0
    %148 = vmatprep.subr.mxu0 0.0
    %149 = vmatpush2.msra.mxu0 0.0
    %150 = vmatprep.subr.mxu0 0.0
    %151 = vmatpush2.msra.mxu0 0.0
    %152 = vmatprep.mubr.f32.mxu0 0.0
    %153 = vmatmul.mubr.f32.gmra.mxu0 %v83
    %v154 = vpop.f32.mrf.mxu0
    %v155 = vadd.f32 0.0, %v154
    %v156 = vpop.f32.mrf.mxu0
    %157 = vmatprep.mubr.f32.mxu0 0.0
    %158 = vmatmul.mubr.f32.gmra.mxu0 %v86
    %v159 = vpop.f32.mrf.mxu0
    %v160 = vadd.f32 0.0, %v159
    %v161 = vpop.f32.mrf.mxu0
    %162 = vdwg.mxu0
    %v163 = vlaneseq
    %v164 = vshrl.u32 %v163, 7
    %v165 = vlaneseq
    %v166 = vand.u32 %v165, 127
    %vm167 = vcmp.le.s32.totalorder %v166, %v164
    %169 = vrot.lane.b32.xlu0 %v155, 120
    %v170 = vpop.permute.xlu0 %169
    %172 = vrot.lane.b32.xlu0 %v155, 112
    %v173 = vpop.permute.xlu0 %172
    %175 = vrot.lane.b32.xlu0 %v155, 104
    %v176 = vpop.permute.xlu0 %175
    %v178 = vcombine.low %v155, %v173
    %v179 = vcombine.high %v155, %v173
    %v181 = vunpack.c.l.s4 1983009808
    %v182 = vunpack.c.0.s8 %v181
    %v183 = vlaneseq
    %v184 = vshrl.u32 %v183, 7
    %v185 = vsub.s32 %v182, %v184
    %v186 = vrot.slane %v178, %v185
    %v188 = vunpack.c.l.s4 1983009808
    %v189 = vunpack.c.0.s8 %v188
    %v190 = vlaneseq
    %v191 = vshrl.u32 %v190, 7
    %v192 = vsub.s32 %v189, %v191
    %v193 = vrot.slane %v179, %v192
    %v194 = vcombine.low %v170, %v176
    %v195 = vcombine.high %v170, %v176
    %v197 = vunpack.c.l.s4 1983009808
    %v198 = vunpack.c.0.s8 %v197
    %v199 = vlaneseq
    %v200 = vshrl.u32 %v199, 7
    %v201 = vsub.s32 %v198, %v200
    %v202 = vrot.slane %v194, %v201
    %v204 = vunpack.c.l.s4 1983009808
    %v205 = vunpack.c.0.s8 %v204
    %v206 = vlaneseq
    %v207 = vshrl.u32 %v206, 7
    %v208 = vsub.s32 %v205, %v207
    %v209 = vrot.slane %v195, %v208
    %v210 = vcombine.low %v186, %v202
    %v211 = vcombine.high %v186, %v202
    %v213 = vunpack.c.l.s4 1934713408
    %v214 = vunpack.c.0.s8 %v213
    %v215 = vlaneseq
    %v216 = vshrl.u32 %v215, 7
    %v217 = vsub.s32 %v214, %v216
    %v218 = vrot.slane %v210, %v217
    %v220 = vunpack.c.l.s4 1934713408
    %v221 = vunpack.c.0.s8 %v220
    %v222 = vlaneseq
    %v223 = vshrl.u32 %v222, 7
    %v224 = vsub.s32 %v221, %v223
    %v225 = vrot.slane %v211, %v224
    %v226 = vcombine.low %v193, %v209
    %v227 = vcombine.high %v193, %v209
    %v229 = vunpack.c.l.s4 1934713408
    %v230 = vunpack.c.0.s8 %v229
    %v231 = vlaneseq
    %v232 = vshrl.u32 %v231, 7
    %v233 = vsub.s32 %v230, %v232
    %v234 = vrot.slane %v226, %v233
    %v236 = vunpack.c.l.s4 1934713408
    %v237 = vunpack.c.0.s8 %v236
    %v238 = vlaneseq
    %v239 = vshrl.u32 %v238, 7
    %v240 = vsub.s32 %v237, %v239
    %v241 = vrot.slane %v227, %v240
    %v242 = vcombine.high %v218, 0.0
    %v243 = vcombine.high %v225, 0.0
    %v244 = vcombine.high %v234, 0.0
    %v245 = vcombine.high %v241, 0.0
    %v246 = vcombine.low %v218, %v225
    %v248 = vunpack.c.l.s4 1983009808
    %v249 = vunpack.c.0.s8 %v248
    %v250 = vlaneseq
    %v251 = vshrl.u32 %v250, 7
    %v252 = vsub.s32 %v249, %v251
    %v253 = vrot.slane %v246, %v252
    %v254 = vcombine.low %v242, %v243
    %v256 = vunpack.c.l.s4 1983009808
    %v257 = vunpack.c.0.s8 %v256
    %v258 = vlaneseq
    %v259 = vshrl.u32 %v258, 7
    %v260 = vsub.s32 %v257, %v259
    %v261 = vrot.slane %v254, %v260
    %v262 = vcombine.low %v234, %v241
    %v264 = vunpack.c.l.s4 1983009808
    %v265 = vunpack.c.0.s8 %v264
    %v266 = vlaneseq
    %v267 = vshrl.u32 %v266, 7
    %v268 = vsub.s32 %v265, %v267
    %v269 = vrot.slane %v262, %v268
    %v270 = vcombine.low %v244, %v245
    %v272 = vunpack.c.l.s4 1983009808
    %v273 = vunpack.c.0.s8 %v272
    %v274 = vlaneseq
    %v275 = vshrl.u32 %v274, 7
    %v276 = vsub.s32 %v273, %v275
    %v277 = vrot.slane %v270, %v276
    %v278 = vcombine.low %v253, %v261
    %v279 = vcombine.high %v253, %v261
    %v281 = vunpack.c.l.s4 1934713408
    %v282 = vunpack.c.0.s8 %v281
    %v283 = vlaneseq
    %v284 = vshrl.u32 %v283, 7
    %v285 = vsub.s32 %v282, %v284
    %v286 = vrot.slane %v278, %v285
    %v288 = vunpack.c.l.s4 1934713408
    %v289 = vunpack.c.0.s8 %v288
    %v290 = vlaneseq
    %v291 = vshrl.u32 %v290, 7
    %v292 = vsub.s32 %v289, %v291
    %v293 = vrot.slane %v279, %v292
    %v294 = vcombine.low %v269, %v277
    %v295 = vcombine.high %v269, %v277
    %v297 = vunpack.c.l.s4 1934713408
    %v298 = vunpack.c.0.s8 %v297
    %v299 = vlaneseq
    %v300 = vshrl.u32 %v299, 7
    %v301 = vsub.s32 %v298, %v300
    %v302 = vrot.slane %v294, %v301
    %v304 = vunpack.c.l.s4 1934713408
    %v305 = vunpack.c.0.s8 %v304
    %v306 = vlaneseq
    %v307 = vshrl.u32 %v306, 7
    %v308 = vsub.s32 %v305, %v307
    %v309 = vrot.slane %v295, %v308
    %v310 = vcombine.low %v286, %v302
    %v311 = vcombine.high %v286, %v302
    %v312 = vcombine.low %v293, %v309
    %v313 = vcombine.high %v293, %v309
    %314 = vrot.lane.b32.xlu0 %v155, 96
    %v315 = vpop.permute.xlu0 %314
    %316 = vrot.lane.b32.xlu0 %v170, 96
    %v317 = vpop.permute.xlu0 %316
    %v320 = vcombine.high %v315, 0.0
    %v322 = vunpack.c.l.s4 1983009808
    %v323 = vunpack.c.0.s8 %v322
    %v324 = vlaneseq
    %v325 = vshrl.u32 %v324, 7
    %v326 = vsub.s32 %v323, %v325
    %v327 = vrot.slane %v315, %v326
    %v329 = vunpack.c.l.s4 1983009808
    %v330 = vunpack.c.0.s8 %v329
    %v331 = vlaneseq
    %v332 = vshrl.u32 %v331, 7
    %v333 = vsub.s32 %v330, %v332
    %v334 = vrot.slane %v320, %v333
    %v335 = vcombine.high %v317, 0.0
    %v337 = vunpack.c.l.s4 1983009808
    %v338 = vunpack.c.0.s8 %v337
    %v339 = vlaneseq
    %v340 = vshrl.u32 %v339, 7
    %v341 = vsub.s32 %v338, %v340
    %v342 = vrot.slane %v317, %v341
    %v344 = vunpack.c.l.s4 1983009808
    %v345 = vunpack.c.0.s8 %v344
    %v346 = vlaneseq
    %v347 = vshrl.u32 %v346, 7
    %v348 = vsub.s32 %v345, %v347
    %v349 = vrot.slane %v335, %v348
    %v350 = vcombine.low %v327, %v342
    %v351 = vcombine.high %v327, %v342
    %v353 = vunpack.c.l.s4 1934713408
    %v354 = vunpack.c.0.s8 %v353
    %v355 = vlaneseq
    %v356 = vshrl.u32 %v355, 7
    %v357 = vsub.s32 %v354, %v356
    %v358 = vrot.slane %v350, %v357
    %v360 = vunpack.c.l.s4 1934713408
    %v361 = vunpack.c.0.s8 %v360
    %v362 = vlaneseq
    %v363 = vshrl.u32 %v362, 7
    %v364 = vsub.s32 %v361, %v363
    %v365 = vrot.slane %v351, %v364
    %v366 = vcombine.low %v334, %v349
    %v367 = vcombine.high %v334, %v349
    %v369 = vunpack.c.l.s4 1934713408
    %v370 = vunpack.c.0.s8 %v369
    %v371 = vlaneseq
    %v372 = vshrl.u32 %v371, 7
    %v373 = vsub.s32 %v370, %v372
    %v374 = vrot.slane %v366, %v373
    %v376 = vunpack.c.l.s4 1934713408
    %v377 = vunpack.c.0.s8 %v376
    %v378 = vlaneseq
    %v379 = vshrl.u32 %v378, 7
    %v380 = vsub.s32 %v377, %v379
    %v381 = vrot.slane %v367, %v380
    %v382 = vcombine.high %v358, 0.0
    %v383 = vcombine.high %v365, 0.0
    %v384 = vcombine.high %v374, 0.0
    %v385 = vcombine.high %v381, 0.0
    %v386 = vcombine.low %v358, %v365
    %v388 = vunpack.c.l.s4 1983009808
    %v389 = vunpack.c.0.s8 %v388
    %v390 = vlaneseq
    %v391 = vshrl.u32 %v390, 7
    %v392 = vsub.s32 %v389, %v391
    %v393 = vrot.slane %v386, %v392
    %v394 = vcombine.low %v382, %v383
    %v396 = vunpack.c.l.s4 1983009808
    %v397 = vunpack.c.0.s8 %v396
    %v398 = vlaneseq
    %v399 = vshrl.u32 %v398, 7
    %v400 = vsub.s32 %v397, %v399
    %v401 = vrot.slane %v394, %v400
    %v402 = vcombine.low %v374, %v381
    %v404 = vunpack.c.l.s4 1983009808
    %v405 = vunpack.c.0.s8 %v404
    %v406 = vlaneseq
    %v407 = vshrl.u32 %v406, 7
    %v408 = vsub.s32 %v405, %v407
    %v409 = vrot.slane %v402, %v408
    %v410 = vcombine.low %v384, %v385
    %v412 = vunpack.c.l.s4 1983009808
    %v413 = vunpack.c.0.s8 %v412
    %v414 = vlaneseq
    %v415 = vshrl.u32 %v414, 7
    %v416 = vsub.s32 %v413, %v415
    %v417 = vrot.slane %v410, %v416
    %v418 = vcombine.low %v393, %v401
    %v420 = vunpack.c.l.s4 1934713408
    %v421 = vunpack.c.0.s8 %v420
    %v422 = vlaneseq
    %v423 = vshrl.u32 %v422, 7
    %v424 = vsub.s32 %v421, %v423
    %v425 = vrot.slane %v418, %v424
    %v426 = vcombine.low %v409, %v417
    %v428 = vunpack.c.l.s4 1934713408
    %v429 = vunpack.c.0.s8 %v428
    %v430 = vlaneseq
    %v431 = vshrl.u32 %v430, 7
    %v432 = vsub.s32 %v429, %v431
    %v433 = vrot.slane %v426, %v432
    %v434 = vcombine.low %v425, %v433
    %v435 = vcombine.high %v425, %v433
    %436 = vrot.lane.b32.xlu0 %v155, 80
    %v437 = vpop.permute.xlu0 %436
    %438 = vrot.lane.b32.xlu0 %v170, 80
    %v439 = vpop.permute.xlu0 %438
    %v442 = vcombine.high %v437, 0.0
    %v444 = vunpack.c.l.s4 1983009808
    %v445 = vunpack.c.0.s8 %v444
    %v446 = vlaneseq
    %v447 = vshrl.u32 %v446, 7
    %v448 = vsub.s32 %v445, %v447
    %v449 = vrot.slane %v437, %v448
    %v451 = vunpack.c.l.s4 1983009808
    %v452 = vunpack.c.0.s8 %v451
    %v453 = vlaneseq
    %v454 = vshrl.u32 %v453, 7
    %v455 = vsub.s32 %v452, %v454
    %v456 = vrot.slane %v442, %v455
    %v457 = vcombine.high %v439, 0.0
    %v459 = vunpack.c.l.s4 1983009808
    %v460 = vunpack.c.0.s8 %v459
    %v461 = vlaneseq
    %v462 = vshrl.u32 %v461, 7
    %v463 = vsub.s32 %v460, %v462
    %v464 = vrot.slane %v439, %v463
    %v466 = vunpack.c.l.s4 1983009808
    %v467 = vunpack.c.0.s8 %v466
    %v468 = vlaneseq
    %v469 = vshrl.u32 %v468, 7
    %v470 = vsub.s32 %v467, %v469
    %v471 = vrot.slane %v457, %v470
    %v472 = vcombine.low %v449, %v464
    %v473 = vcombine.high %v449, %v464
    %v475 = vunpack.c.l.s4 1934713408
    %v476 = vunpack.c.0.s8 %v475
    %v477 = vlaneseq
    %v478 = vshrl.u32 %v477, 7
    %v479 = vsub.s32 %v476, %v478
    %v480 = vrot.slane %v472, %v479
    %v482 = vunpack.c.l.s4 1934713408
    %v483 = vunpack.c.0.s8 %v482
    %v484 = vlaneseq
    %v485 = vshrl.u32 %v484, 7
    %v486 = vsub.s32 %v483, %v485
    %v487 = vrot.slane %v473, %v486
    %v488 = vcombine.low %v456, %v471
    %v489 = vcombine.high %v456, %v471
    %v491 = vunpack.c.l.s4 1934713408
    %v492 = vunpack.c.0.s8 %v491
    %v493 = vlaneseq
    %v494 = vshrl.u32 %v493, 7
    %v495 = vsub.s32 %v492, %v494
    %v496 = vrot.slane %v488, %v495
    %v498 = vunpack.c.l.s4 1934713408
    %v499 = vunpack.c.0.s8 %v498
    %v500 = vlaneseq
    %v501 = vshrl.u32 %v500, 7
    %v502 = vsub.s32 %v499, %v501
    %v503 = vrot.slane %v489, %v502
    %v504 = vcombine.high %v480, 0.0
    %v505 = vcombine.high %v487, 0.0
    %v506 = vcombine.high %v496, 0.0
    %v507 = vcombine.high %v503, 0.0
    %v508 = vcombine.low %v480, %v487
    %v510 = vunpack.c.l.s4 1983009808
    %v511 = vunpack.c.0.s8 %v510
    %v512 = vlaneseq
    %v513 = vshrl.u32 %v512, 7
    %v514 = vsub.s32 %v511, %v513
    %v515 = vrot.slane %v508, %v514
    %v516 = vcombine.low %v504, %v505
    %v518 = vunpack.c.l.s4 1983009808
    %v519 = vunpack.c.0.s8 %v518
    %v520 = vlaneseq
    %v521 = vshrl.u32 %v520, 7
    %v522 = vsub.s32 %v519, %v521
    %v523 = vrot.slane %v516, %v522
    %v524 = vcombine.low %v496, %v503
    %v526 = vunpack.c.l.s4 1983009808
    %v527 = vunpack.c.0.s8 %v526
    %v528 = vlaneseq
    %v529 = vshrl.u32 %v528, 7
    %v530 = vsub.s32 %v527, %v529
    %v531 = vrot.slane %v524, %v530
    %v532 = vcombine.low %v506, %v507
    %v534 = vunpack.c.l.s4 1983009808
    %v535 = vunpack.c.0.s8 %v534
    %v536 = vlaneseq
    %v537 = vshrl.u32 %v536, 7
    %v538 = vsub.s32 %v535, %v537
    %v539 = vrot.slane %v532, %v538
    %v540 = vcombine.low %v515, %v523
    %v542 = vunpack.c.l.s4 1934713408
    %v543 = vunpack.c.0.s8 %v542
    %v544 = vlaneseq
    %v545 = vshrl.u32 %v544, 7
    %v546 = vsub.s32 %v543, %v545
    %v547 = vrot.slane %v540, %v546
    %v548 = vcombine.low %v531, %v539
    %v550 = vunpack.c.l.s4 1934713408
    %v551 = vunpack.c.0.s8 %v550
    %v552 = vlaneseq
    %v553 = vshrl.u32 %v552, 7
    %v554 = vsub.s32 %v551, %v553
    %v555 = vrot.slane %v548, %v554
    %v556 = vcombine.low %v547, %v555
    %v557 = vcombine.high %v547, %v555
    %vm558 = vcmask 64512
    %v560 = vsel %vm558, %v310, 0
    %v563 = vsel %vm558, %v434, 0
    %565 = vmatprep.subr.mxu0 0.0
    %566 = vmatpush1.xpose.msra.mxu0 0.0
    %567 = vmatprep.subr.mxu0 0.0
    %568 = vmatpush1.xpose.msra.mxu0 0.0
    %569 = vmatprep.subr.mxu0 0.0
    %570 = vmatpush1.xpose.msra.mxu0 0.0
    %571 = vmatprep.subr.mxu0 0.0
    %572 = vmatpush1.xpose.msra.mxu0 0.0
    %573 = vmatprep.subr.mxu0 0.0
    %574 = vmatpush1.xpose.msra.mxu0 0.0
    %575 = vmatprep.subr.mxu0 0.0
    %576 = vmatpush1.xpose.msra.mxu0 0.0
    %577 = vmatprep.subr.mxu0 0.0
    %578 = vmatpush1.xpose.msra.mxu0 0.0
    %579 = vmatprep.subr.mxu0 0.0
    %580 = vmatpush1.xpose.msra.mxu0 0.0
    %581 = vmatprep.subr.mxu0 0.0
    %582 = vmatpush1.xpose.msra.mxu0 0.0
    %583 = vmatprep.subr.mxu0 0.0
    %584 = vmatpush1.xpose.msra.mxu0 0.0
    %585 = vmatprep.subr.mxu0 0.0
    %586 = vmatpush1.xpose.msra.mxu0 0.0
    %587 = vmatprep.subr.mxu0 0.0
    %588 = vmatpush1.xpose.msra.mxu0 0.0
    %589 = vmatprep.subr.mxu0 0.0
    %590 = vmatpush1.xpose.msra.mxu0 0.0
    %591 = vmatprep.subr.mxu0 0.0
    %592 = vmatpush1.xpose.msra.mxu0 0.0
    %593 = vmatprep.subr.mxu0 0.0
    %594 = vmatpush1.xpose.msra.mxu0 0.0
    %595 = vmatprep.subr.mxu0 0.0
    %596 = vmatpush1.xpose.msra.mxu0 %v563
    %597 = vmatprep.subr.mxu0 0.0
    %598 = vmatpush2.xpose.msra.mxu0 0.0
    %599 = vmatprep.subr.mxu0 0.0
    %600 = vmatpush2.xpose.msra.mxu0 0.0
    %601 = vmatprep.subr.mxu0 0.0
    %602 = vmatpush2.xpose.msra.mxu0 0.0
    %603 = vmatprep.subr.mxu0 0.0
    %604 = vmatpush2.xpose.msra.mxu0 0.0
    %605 = vmatprep.subr.mxu0 0.0
    %606 = vmatpush2.xpose.msra.mxu0 0.0
    %607 = vmatprep.subr.mxu0 0.0
    %608 = vmatpush2.xpose.msra.mxu0 0.0
    %609 = vmatprep.subr.mxu0 0.0
    %610 = vmatpush2.xpose.msra.mxu0 0.0
    %611 = vmatprep.subr.mxu0 0.0
    %612 = vmatpush2.xpose.msra.mxu0 0.0
    %613 = vmatprep.subr.mxu0 0.0
    %614 = vmatpush2.xpose.msra.mxu0 0.0
    %615 = vmatprep.subr.mxu0 0.0
    %616 = vmatpush2.xpose.msra.mxu0 0.0
    %617 = vmatprep.subr.mxu0 0.0
    %618 = vmatpush2.xpose.msra.mxu0 0.0
    %619 = vmatprep.subr.mxu0 0.0
    %620 = vmatpush2.xpose.msra.mxu0 0.0
    %621 = vmatprep.subr.mxu0 0.0
    %622 = vmatpush2.xpose.msra.mxu0 0.0
    %623 = vmatprep.subr.mxu0 0.0
    %624 = vmatpush2.xpose.msra.mxu0 0.0
    %625 = vmatprep.subr.mxu0 0.0
    %626 = vmatpush2.xpose.msra.mxu0 0.0
    %627 = vmatprep.subr.mxu0 0.0
    %628 = vmatpush2.xpose.msra.mxu0 0.0
    %629 = vmatprep.mubr.f32.mxu0 0.0
    %630 = vmatmul.mubr.f32.gmra.mxu0 %v560
    %v631 = vpop.f32.mrf.mxu0
    %v632 = vadd.f32 0.0, %v631
    %v633 = vpop.f32.mrf.mxu0
    %634 = vdwg.mxu0
    %v636 = vsel %vm558, %v311, 0
    %638 = vmatprep.subr.mxu0 0.0
    %639 = vmatpush1.xpose.msra.mxu0 0.0
    %640 = vmatprep.subr.mxu0 0.0
    %641 = vmatpush1.xpose.msra.mxu0 0.0
    %642 = vmatprep.subr.mxu0 0.0
    %643 = vmatpush1.xpose.msra.mxu0 0.0
    %644 = vmatprep.subr.mxu0 0.0
    %645 = vmatpush1.xpose.msra.mxu0 0.0
    %646 = vmatprep.subr.mxu0 0.0
    %647 = vmatpush1.xpose.msra.mxu0 0.0
    %648 = vmatprep.subr.mxu0 0.0
    %649 = vmatpush1.xpose.msra.mxu0 0.0
    %650 = vmatprep.subr.mxu0 0.0
    %651 = vmatpush1.xpose.msra.mxu0 0.0
    %652 = vmatprep.subr.mxu0 0.0
    %653 = vmatpush1.xpose.msra.mxu0 0.0
    %654 = vmatprep.subr.mxu0 0.0
    %655 = vmatpush1.xpose.msra.mxu0 0.0
    %656 = vmatprep.subr.mxu0 0.0
    %657 = vmatpush1.xpose.msra.mxu0 0.0
    %658 = vmatprep.subr.mxu0 0.0
    %659 = vmatpush1.xpose.msra.mxu0 0.0
    %660 = vmatprep.subr.mxu0 0.0
    %661 = vmatpush1.xpose.msra.mxu0 0.0
    %662 = vmatprep.subr.mxu0 0.0
    %663 = vmatpush1.xpose.msra.mxu0 0.0
    %664 = vmatprep.subr.mxu0 0.0
    %665 = vmatpush1.xpose.msra.mxu0 0.0
    %666 = vmatprep.subr.mxu0 0.0
    %667 = vmatpush1.xpose.msra.mxu0 0.0
    %668 = vmatprep.subr.mxu0 0.0
    %669 = vmatpush1.xpose.msra.mxu0 %v563
    %670 = vmatprep.subr.mxu0 0.0
    %671 = vmatpush2.xpose.msra.mxu0 0.0
    %672 = vmatprep.subr.mxu0 0.0
    %673 = vmatpush2.xpose.msra.mxu0 0.0
    %674 = vmatprep.subr.mxu0 0.0
    %675 = vmatpush2.xpose.msra.mxu0 0.0
    %676 = vmatprep.subr.mxu0 0.0
    %677 = vmatpush2.xpose.msra.mxu0 0.0
    %678 = vmatprep.subr.mxu0 0.0
    %679 = vmatpush2.xpose.msra.mxu0 0.0
    %680 = vmatprep.subr.mxu0 0.0
    %681 = vmatpush2.xpose.msra.mxu0 0.0
    %682 = vmatprep.subr.mxu0 0.0
    %683 = vmatpush2.xpose.msra.mxu0 0.0
    %684 = vmatprep.subr.mxu0 0.0
    %685 = vmatpush2.xpose.msra.mxu0 0.0
    %686 = vmatprep.subr.mxu0 0.0
    %687 = vmatpush2.xpose.msra.mxu0 0.0
    %688 = vmatprep.subr.mxu0 0.0
    %689 = vmatpush2.xpose.msra.mxu0 0.0
    %690 = vmatprep.subr.mxu0 0.0
    %691 = vmatpush2.xpose.msra.mxu0 0.0
    %692 = vmatprep.subr.mxu0 0.0
    %693 = vmatpush2.xpose.msra.mxu0 0.0
    %694 = vmatprep.subr.mxu0 0.0
    %695 = vmatpush2.xpose.msra.mxu0 0.0
    %696 = vmatprep.subr.mxu0 0.0
    %697 = vmatpush2.xpose.msra.mxu0 0.0
    %698 = vmatprep.subr.mxu0 0.0
    %699 = vmatpush2.xpose.msra.mxu0 0.0
    %700 = vmatprep.subr.mxu0 0.0
    %701 = vmatpush2.xpose.msra.mxu0 0.0
    %702 = vmatprep.mubr.f32.mxu0 0.0
    %703 = vmatmul.mubr.f32.gmra.mxu0 %v636
    %v704 = vpop.f32.mrf.mxu0
    %v705 = vadd.f32 0.0, %v704
    %v706 = vpop.f32.mrf.mxu0
    %707 = vdwg.mxu0
    %v709 = vsel %vm558, %v312, 0
    %v712 = vsel %vm558, %v435, 0
    %714 = vmatprep.subr.mxu0 0.0
    %715 = vmatpush1.xpose.msra.mxu0 0.0
    %716 = vmatprep.subr.mxu0 0.0
    %717 = vmatpush1.xpose.msra.mxu0 0.0
    %718 = vmatprep.subr.mxu0 0.0
    %719 = vmatpush1.xpose.msra.mxu0 0.0
    %720 = vmatprep.subr.mxu0 0.0
    %721 = vmatpush1.xpose.msra.mxu0 0.0
    %722 = vmatprep.subr.mxu0 0.0
    %723 = vmatpush1.xpose.msra.mxu0 0.0
    %724 = vmatprep.subr.mxu0 0.0
    %725 = vmatpush1.xpose.msra.mxu0 0.0
    %726 = vmatprep.subr.mxu0 0.0
    %727 = vmatpush1.xpose.msra.mxu0 0.0
    %728 = vmatprep.subr.mxu0 0.0
    %729 = vmatpush1.xpose.msra.mxu0 0.0
    %730 = vmatprep.subr.mxu0 0.0
    %731 = vmatpush1.xpose.msra.mxu0 0.0
    %732 = vmatprep.subr.mxu0 0.0
    %733 = vmatpush1.xpose.msra.mxu0 0.0
    %734 = vmatprep.subr.mxu0 0.0
    %735 = vmatpush1.xpose.msra.mxu0 0.0
    %736 = vmatprep.subr.mxu0 0.0
    %737 = vmatpush1.xpose.msra.mxu0 0.0
    %738 = vmatprep.subr.mxu0 0.0
    %739 = vmatpush1.xpose.msra.mxu0 0.0
    %740 = vmatprep.subr.mxu0 0.0
    %741 = vmatpush1.xpose.msra.mxu0 0.0
    %742 = vmatprep.subr.mxu0 0.0
    %743 = vmatpush1.xpose.msra.mxu0 0.0
    %744 = vmatprep.subr.mxu0 0.0
    %745 = vmatpush1.xpose.msra.mxu0 %v712
    %746 = vmatprep.subr.mxu0 0.0
    %747 = vmatpush2.xpose.msra.mxu0 0.0
    %748 = vmatprep.subr.mxu0 0.0
    %749 = vmatpush2.xpose.msra.mxu0 0.0
    %750 = vmatprep.subr.mxu0 0.0
    %751 = vmatpush2.xpose.msra.mxu0 0.0
    %752 = vmatprep.subr.mxu0 0.0
    %753 = vmatpush2.xpose.msra.mxu0 0.0
    %754 = vmatprep.subr.mxu0 0.0
    %755 = vmatpush2.xpose.msra.mxu0 0.0
    %756 = vmatprep.subr.mxu0 0.0
    %757 = vmatpush2.xpose.msra.mxu0 0.0
    %758 = vmatprep.subr.mxu0 0.0
    %759 = vmatpush2.xpose.msra.mxu0 0.0
    %760 = vmatprep.subr.mxu0 0.0
    %761 = vmatpush2.xpose.msra.mxu0 0.0
    %762 = vmatprep.subr.mxu0 0.0
    %763 = vmatpush2.xpose.msra.mxu0 0.0
    %764 = vmatprep.subr.mxu0 0.0
    %765 = vmatpush2.xpose.msra.mxu0 0.0
    %766 = vmatprep.subr.mxu0 0.0
    %767 = vmatpush2.xpose.msra.mxu0 0.0
    %768 = vmatprep.subr.mxu0 0.0
    %769 = vmatpush2.xpose.msra.mxu0 0.0
    %770 = vmatprep.subr.mxu0 0.0
    %771 = vmatpush2.xpose.msra.mxu0 0.0
    %772 = vmatprep.subr.mxu0 0.0
    %773 = vmatpush2.xpose.msra.mxu0 0.0
    %774 = vmatprep.subr.mxu0 0.0
    %775 = vmatpush2.xpose.msra.mxu0 0.0
    %776 = vmatprep.subr.mxu0 0.0
    %777 = vmatpush2.xpose.msra.mxu0 0.0
    %778 = vmatprep.mubr.f32.mxu0 0.0
    %779 = vmatmul.mubr.f32.gmra.mxu0 %v709
    %v780 = vpop.f32.mrf.mxu0
    %v781 = vadd.f32 0.0, %v780
    %v782 = vpop.f32.mrf.mxu0
    %783 = vdwg.mxu0
    %v785 = vsel %vm558, %v313, 0
    %787 = vmatprep.subr.mxu0 0.0
    %788 = vmatpush1.xpose.msra.mxu0 0.0
    %789 = vmatprep.subr.mxu0 0.0
    %790 = vmatpush1.xpose.msra.mxu0 0.0
    %791 = vmatprep.subr.mxu0 0.0
    %792 = vmatpush1.xpose.msra.mxu0 0.0
    %793 = vmatprep.subr.mxu0 0.0
    %794 = vmatpush1.xpose.msra.mxu0 0.0
    %795 = vmatprep.subr.mxu0 0.0
    %796 = vmatpush1.xpose.msra.mxu0 0.0
    %797 = vmatprep.subr.mxu0 0.0
    %798 = vmatpush1.xpose.msra.mxu0 0.0
    %799 = vmatprep.subr.mxu0 0.0
    %800 = vmatpush1.xpose.msra.mxu0 0.0
    %801 = vmatprep.subr.mxu0 0.0
    %802 = vmatpush1.xpose.msra.mxu0 0.0
    %803 = vmatprep.subr.mxu0 0.0
    %804 = vmatpush1.xpose.msra.mxu0 0.0
    %805 = vmatprep.subr.mxu0 0.0
    %806 = vmatpush1.xpose.msra.mxu0 0.0
    %807 = vmatprep.subr.mxu0 0.0
    %808 = vmatpush1.xpose.msra.mxu0 0.0
    %809 = vmatprep.subr.mxu0 0.0
    %810 = vmatpush1.xpose.msra.mxu0 0.0
    %811 = vmatprep.subr.mxu0 0.0
    %812 = vmatpush1.xpose.msra.mxu0 0.0
    %813 = vmatprep.subr.mxu0 0.0
    %814 = vmatpush1.xpose.msra.mxu0 0.0
    %815 = vmatprep.subr.mxu0 0.0
    %816 = vmatpush1.xpose.msra.mxu0 0.0
    %817 = vmatprep.subr.mxu0 0.0
    %818 = vmatpush1.xpose.msra.mxu0 %v712
    %819 = vmatprep.subr.mxu0 0.0
    %820 = vmatpush2.xpose.msra.mxu0 0.0
    %821 = vmatprep.subr.mxu0 0.0
    %822 = vmatpush2.xpose.msra.mxu0 0.0
    %823 = vmatprep.subr.mxu0 0.0
    %824 = vmatpush2.xpose.msra.mxu0 0.0
    %825 = vmatprep.subr.mxu0 0.0
    %826 = vmatpush2.xpose.msra.mxu0 0.0
    %827 = vmatprep.subr.mxu0 0.0
    %828 = vmatpush2.xpose.msra.mxu0 0.0
    %829 = vmatprep.subr.mxu0 0.0
    %830 = vmatpush2.xpose.msra.mxu0 0.0
    %831 = vmatprep.subr.mxu0 0.0
    %832 = vmatpush2.xpose.msra.mxu0 0.0
    %833 = vmatprep.subr.mxu0 0.0
    %834 = vmatpush2.xpose.msra.mxu0 0.0
    %835 = vmatprep.subr.mxu0 0.0
    %836 = vmatpush2.xpose.msra.mxu0 0.0
    %837 = vmatprep.subr.mxu0 0.0
    %838 = vmatpush2.xpose.msra.mxu0 0.0
    %839 = vmatprep.subr.mxu0 0.0
    %840 = vmatpush2.xpose.msra.mxu0 0.0
    %841 = vmatprep.subr.mxu0 0.0
    %842 = vmatpush2.xpose.msra.mxu0 0.0
    %843 = vmatprep.subr.mxu0 0.0
    %844 = vmatpush2.xpose.msra.mxu0 0.0
    %845 = vmatprep.subr.mxu0 0.0
    %846 = vmatpush2.xpose.msra.mxu0 0.0
    %847 = vmatprep.subr.mxu0 0.0
    %848 = vmatpush2.xpose.msra.mxu0 0.0
    %849 = vmatprep.subr.mxu0 0.0
    %850 = vmatpush2.xpose.msra.mxu0 0.0
    %851 = vmatprep.mubr.f32.mxu0 0.0
    %852 = vmatmul.mubr.f32.gmra.mxu0 %v785
    %v853 = vpop.f32.mrf.mxu0
    %v854 = vadd.f32 0.0, %v853
    %v855 = vpop.f32.mrf.mxu0
    %856 = vdwg.mxu0
    %v857 = vmul.f32 %v632, 0.35355338
    %v858 = vmul.f32 %v705, 0.35355338
    %v859 = vmul.f32 %v781, 0.35355338
    %v860 = vmul.f32 %v854, 0.35355338
    %v861 = vsel %vm167, 1, 0
    %vm862 = vcmp.eq.s32.totalorder %v861, 1
    %v863 = vsel %vm862, %v857, -inf
    %v864 = vsel %vm862, %v858, -inf
    %v865 = vsel %vm862, %v859, -inf
    %v866 = vsel %vm862, %v860, -inf
    %v867 = vsel %vm558, %v863, -inf
    %868 = vmax.xlane.f32.xlu0 %v867
    %v869 = vpop.xlane.xlu0 %868
    %v870 = vsel %vm558, %v864, -inf
    %871 = vmax.xlane.f32.xlu0 %v870
    %v872 = vpop.xlane.xlu0 %871
    %v873 = vsel %vm558, %v865, -inf
    %874 = vmax.xlane.f32.xlu0 %v873
    %v875 = vpop.xlane.xlu0 %874
    %v876 = vsel %vm558, %v866, -inf
    %877 = vmax.xlane.f32.xlu0 %v876
    %v878 = vpop.xlane.xlu0 %877
    %v879 = vsub.f32 %v863, %v869
    %v880 = vsub.f32 %v864, %v872
    %v881 = vsub.f32 %v865, %v875
    %v882 = vsub.f32 %v866, %v878
    %v883 = vmul.f32 %v879, 1.442695
    %v884 = vpow.pop %v883
    %v885 = vmul.f32 %v880, 1.442695
    %v886 = vpow.pop %v885
    %v887 = vmul.f32 %v881, 1.442695
    %v888 = vpow.pop %v887
    %v889 = vmul.f32 %v882, 1.442695
    %v890 = vpow.pop %v889
    %v891 = vsel %vm558, %v884, 0.0
    %892 = vadd.xlane.f32.xlu0 %v891
    %v893 = vpop.xlane.xlu0 %892
    %v894 = vsel %vm558, %v886, 0.0
    %895 = vadd.xlane.f32.xlu0 %v894
    %v896 = vpop.xlane.xlu0 %895
    %v897 = vsel %vm558, %v888, 0.0
    %898 = vadd.xlane.f32.xlu0 %v897
    %v899 = vpop.xlane.xlu0 %898
    %v900 = vsel %vm558, %v890, 0.0
    %901 = vadd.xlane.f32.xlu0 %v900
    %v902 = vpop.xlane.xlu0 %901
    %v903 = vrcp.pop %v893
    %v904 = vrcp.pop %v896
    %v905 = vrcp.pop %v899
    %v906 = vrcp.pop %v902
    %v907 = vmul.f32 %v884, %v903
    %v908 = vmul.f32 %v886, %v904
    %v909 = vmul.f32 %v888, %v905
    %v910 = vmul.f32 %v890, %v906
    %v912 = vsel %vm558, %v907, 0
    %914 = vmatprep.subr.mxu0 0.0
    %915 = vmatpush1.msra.mxu0 0.0
    %916 = vmatprep.subr.mxu0 0.0
    %917 = vmatpush1.msra.mxu0 0.0
    %918 = vmatprep.subr.mxu0 0.0
    %919 = vmatpush1.msra.mxu0 0.0
    %920 = vmatprep.subr.mxu0 0.0
    %921 = vmatpush1.msra.mxu0 0.0
    %922 = vmatprep.subr.mxu0 0.0
    %923 = vmatpush1.msra.mxu0 0.0
    %924 = vmatprep.subr.mxu0 0.0
    %925 = vmatpush1.msra.mxu0 0.0
    %926 = vmatprep.subr.mxu0 0.0
    %927 = vmatpush1.msra.mxu0 0.0
    %928 = vmatprep.subr.mxu0 0.0
    %929 = vmatpush1.msra.mxu0 0.0
    %930 = vmatprep.subr.mxu0 0.0
    %931 = vmatpush1.msra.mxu0 0.0
    %932 = vmatprep.subr.mxu0 0.0
    %933 = vmatpush1.msra.mxu0 0.0
    %934 = vmatprep.subr.mxu0 0.0
    %935 = vmatpush1.msra.mxu0 0.0
    %936 = vmatprep.subr.mxu0 0.0
    %937 = vmatpush1.msra.mxu0 0.0
    %938 = vmatprep.subr.mxu0 0.0
    %939 = vmatpush1.msra.mxu0 0.0
    %940 = vmatprep.subr.mxu0 0.0
    %941 = vmatpush1.msra.mxu0 0.0
    %942 = vmatprep.subr.mxu0 0.0
    %943 = vmatpush1.msra.mxu0 0.0
    %944 = vmatprep.subr.mxu0 0.0
    %945 = vmatpush1.msra.mxu0 %v556
    %946 = vmatprep.subr.mxu0 0.0
    %947 = vmatpush2.msra.mxu0 0.0
    %948 = vmatprep.subr.mxu0 0.0
    %949 = vmatpush2.msra.mxu0 0.0
    %950 = vmatprep.subr.mxu0 0.0
    %951 = vmatpush2.msra.mxu0 0.0
    %952 = vmatprep.subr.mxu0 0.0
    %953 = vmatpush2.msra.mxu0 0.0
    %954 = vmatprep.subr.mxu0 0.0
    %955 = vmatpush2.msra.mxu0 0.0
    %956 = vmatprep.subr.mxu0 0.0
    %957 = vmatpush2.msra.mxu0 0.0
    %958 = vmatprep.subr.mxu0 0.0
    %959 = vmatpush2.msra.mxu0 0.0
    %960 = vmatprep.subr.mxu0 0.0
    %961 = vmatpush2.msra.mxu0 0.0
    %962 = vmatprep.subr.mxu0 0.0
    %963 = vmatpush2.msra.mxu0 0.0
    %964 = vmatprep.subr.mxu0 0.0
    %965 = vmatpush2.msra.mxu0 0.0
    %966 = vmatprep.subr.mxu0 0.0
    %967 = vmatpush2.msra.mxu0 0.0
    %968 = vmatprep.subr.mxu0 0.0
    %969 = vmatpush2.msra.mxu0 0.0
    %970 = vmatprep.subr.mxu0 0.0
    %971 = vmatpush2.msra.mxu0 0.0
    %972 = vmatprep.subr.mxu0 0.0
    %973 = vmatpush2.msra.mxu0 0.0
    %974 = vmatprep.subr.mxu0 0.0
    %975 = vmatpush2.msra.mxu0 0.0
    %976 = vmatprep.subr.mxu0 0.0
    %977 = vmatpush2.msra.mxu0 0.0
    %978 = vmatprep.mubr.f32.mxu0 0.0
    %979 = vmatmul.mubr.f32.gmra.mxu0 %v912
    %v980 = vpop.f32.mrf.mxu0
    %v981 = vadd.f32 0.0, %v980
    %v982 = vpop.f32.mrf.mxu0
    %983 = vdwg.mxu0
    %v985 = vsel %vm558, %v908, 0
    %987 = vmatprep.subr.mxu0 0.0
    %988 = vmatpush1.msra.mxu0 0.0
    %989 = vmatprep.subr.mxu0 0.0
    %990 = vmatpush1.msra.mxu0 0.0
    %991 = vmatprep.subr.mxu0 0.0
    %992 = vmatpush1.msra.mxu0 0.0
    %993 = vmatprep.subr.mxu0 0.0
    %994 = vmatpush1.msra.mxu0 0.0
    %995 = vmatprep.subr.mxu0 0.0
    %996 = vmatpush1.msra.mxu0 0.0
    %997 = vmatprep.subr.mxu0 0.0
    %998 = vmatpush1.msra.mxu0 0.0
    %999 = vmatprep.subr.mxu0 0.0
    %1000 = vmatpush1.msra.mxu0 0.0
    %1001 = vmatprep.subr.mxu0 0.0
    %1002 = vmatpush1.msra.mxu0 0.0
    %1003 = vmatprep.subr.mxu0 0.0
    %1004 = vmatpush1.msra.mxu0 0.0
    %1005 = vmatprep.subr.mxu0 0.0
    %1006 = vmatpush1.msra.mxu0 0.0
    %1007 = vmatprep.subr.mxu0 0.0
    %1008 = vmatpush1.msra.mxu0 0.0
    %1009 = vmatprep.subr.mxu0 0.0
    %1010 = vmatpush1.msra.mxu0 0.0
    %1011 = vmatprep.subr.mxu0 0.0
    %1012 = vmatpush1.msra.mxu0 0.0
    %1013 = vmatprep.subr.mxu0 0.0
    %1014 = vmatpush1.msra.mxu0 0.0
    %1015 = vmatprep.subr.mxu0 0.0
    %1016 = vmatpush1.msra.mxu0 0.0
    %1017 = vmatprep.subr.mxu0 0.0
    %1018 = vmatpush1.msra.mxu0 %v556
    %1019 = vmatprep.subr.mxu0 0.0
    %1020 = vmatpush2.msra.mxu0 0.0
    %1021 = vmatprep.subr.mxu0 0.0
    %1022 = vmatpush2.msra.mxu0 0.0
    %1023 = vmatprep.subr.mxu0 0.0
    %1024 = vmatpush2.msra.mxu0 0.0
    %1025 = vmatprep.subr.mxu0 0.0
    %1026 = vmatpush2.msra.mxu0 0.0
    %1027 = vmatprep.subr.mxu0 0.0
    %1028 = vmatpush2.msra.mxu0 0.0
    %1029 = vmatprep.subr.mxu0 0.0
    %1030 = vmatpush2.msra.mxu0 0.0
    %1031 = vmatprep.subr.mxu0 0.0
    %1032 = vmatpush2.msra.mxu0 0.0
    %1033 = vmatprep.subr.mxu0 0.0
    %1034 = vmatpush2.msra.mxu0 0.0
    %1035 = vmatprep.subr.mxu0 0.0
    %1036 = vmatpush2.msra.mxu0 0.0
    %1037 = vmatprep.subr.mxu0 0.0
    %1038 = vmatpush2.msra.mxu0 0.0
    %1039 = vmatprep.subr.mxu0 0.0
    %1040 = vmatpush2.msra.mxu0 0.0
    %1041 = vmatprep.subr.mxu0 0.0
    %1042 = vmatpush2.msra.mxu0 0.0
    %1043 = vmatprep.subr.mxu0 0.0
    %1044 = vmatpush2.msra.mxu0 0.0
    %1045 = vmatprep.subr.mxu0 0.0
    %1046 = vmatpush2.msra.mxu0 0.0
    %1047 = vmatprep.subr.mxu0 0.0
    %1048 = vmatpush2.msra.mxu0 0.0
    %1049 = vmatprep.subr.mxu0 0.0
    %1050 = vmatpush2.msra.mxu0 0.0
    %1051 = vmatprep.mubr.f32.mxu0 0.0
    %1052 = vmatmul.mubr.f32.gmra.mxu0 %v985
    %v1053 = vpop.f32.mrf.mxu0
    %v1054 = vadd.f32 0.0, %v1053
    %v1055 = vpop.f32.mrf.mxu0
    %1056 = vdwg.mxu0
    %v1058 = vsel %vm558, %v909, 0
    %1060 = vmatprep.subr.mxu0 0.0
    %1061 = vmatpush1.msra.mxu0 0.0
    %1062 = vmatprep.subr.mxu0 0.0
    %1063 = vmatpush1.msra.mxu0 0.0
    %1064 = vmatprep.subr.mxu0 0.0
    %1065 = vmatpush1.msra.mxu0 0.0
    %1066 = vmatprep.subr.mxu0 0.0
    %1067 = vmatpush1.msra.mxu0 0.0
    %1068 = vmatprep.subr.mxu0 0.0
    %1069 = vmatpush1.msra.mxu0 0.0
    %1070 = vmatprep.subr.mxu0 0.0
    %1071 = vmatpush1.msra.mxu0 0.0
    %1072 = vmatprep.subr.mxu0 0.0
    %1073 = vmatpush1.msra.mxu0 0.0
    %1074 = vmatprep.subr.mxu0 0.0
    %1075 = vmatpush1.msra.mxu0 0.0
    %1076 = vmatprep.subr.mxu0 0.0
    %1077 = vmatpush1.msra.mxu0 0.0
    %1078 = vmatprep.subr.mxu0 0.0
    %1079 = vmatpush1.msra.mxu0 0.0
    %1080 = vmatprep.subr.mxu0 0.0
    %1081 = vmatpush1.msra.mxu0 0.0
    %1082 = vmatprep.subr.mxu0 0.0
    %1083 = vmatpush1.msra.mxu0 0.0
    %1084 = vmatprep.subr.mxu0 0.0
    %1085 = vmatpush1.msra.mxu0 0.0
    %1086 = vmatprep.subr.mxu0 0.0
    %1087 = vmatpush1.msra.mxu0 0.0
    %1088 = vmatprep.subr.mxu0 0.0
    %1089 = vmatpush1.msra.mxu0 0.0
    %1090 = vmatprep.subr.mxu0 0.0
    %1091 = vmatpush1.msra.mxu0 %v557
    %1092 = vmatprep.subr.mxu0 0.0
    %1093 = vmatpush2.msra.mxu0 0.0
    %1094 = vmatprep.subr.mxu0 0.0
    %1095 = vmatpush2.msra.mxu0 0.0
    %1096 = vmatprep.subr.mxu0 0.0
    %1097 = vmatpush2.msra.mxu0 0.0
    %1098 = vmatprep.subr.mxu0 0.0
    %1099 = vmatpush2.msra.mxu0 0.0
    %1100 = vmatprep.subr.mxu0 0.0
    %1101 = vmatpush2.msra.mxu0 0.0
    %1102 = vmatprep.subr.mxu0 0.0
    %1103 = vmatpush2.msra.mxu0 0.0
    %1104 = vmatprep.subr.mxu0 0.0
    %1105 = vmatpush2.msra.mxu0 0.0
    %1106 = vmatprep.subr.mxu0 0.0
    %1107 = vmatpush2.msra.mxu0 0.0
    %1108 = vmatprep.subr.mxu0 0.0
    %1109 = vmatpush2.msra.mxu0 0.0
    %1110 = vmatprep.subr.mxu0 0.0
    %1111 = vmatpush2.msra.mxu0 0.0
    %1112 = vmatprep.subr.mxu0 0.0
    %1113 = vmatpush2.msra.mxu0 0.0
    %1114 = vmatprep.subr.mxu0 0.0
    %1115 = vmatpush2.msra.mxu0 0.0
    %1116 = vmatprep.subr.mxu0 0.0
    %1117 = vmatpush2.msra.mxu0 0.0
    %1118 = vmatprep.subr.mxu0 0.0
    %1119 = vmatpush2.msra.mxu0 0.0
    %1120 = vmatprep.subr.mxu0 0.0
    %1121 = vmatpush2.msra.mxu0 0.0
    %1122 = vmatprep.subr.mxu0 0.0
    %1123 = vmatpush2.msra.mxu0 0.0
    %1124 = vmatprep.mubr.f32.mxu0 0.0
    %1125 = vmatmul.mubr.f32.gmra.mxu0 %v1058
    %v1126 = vpop.f32.mrf.mxu0
    %v1127 = vadd.f32 0.0, %v1126
    %v1128 = vpop.f32.mrf.mxu0
    %1129 = vdwg.mxu0
    %v1131 = vsel %vm558, %v910, 0
    %1133 = vmatprep.subr.mxu0 0.0
    %1134 = vmatpush1.msra.mxu0 0.0
    %1135 = vmatprep.subr.mxu0 0.0
    %1136 = vmatpush1.msra.mxu0 0.0
    %1137 = vmatprep.subr.mxu0 0.0
    %1138 = vmatpush1.msra.mxu0 0.0
    %1139 = vmatprep.subr.mxu0 0.0
    %1140 = vmatpush1.msra.mxu0 0.0
    %1141 = vmatprep.subr.mxu0 0.0
    %1142 = vmatpush1.msra.mxu0 0.0
    %1143 = vmatprep.subr.mxu0 0.0
    %1144 = vmatpush1.msra.mxu0 0.0
    %1145 = vmatprep.subr.mxu0 0.0
    %1146 = vmatpush1.msra.mxu0 0.0
    %1147 = vmatprep.subr.mxu0 0.0
    %1148 = vmatpush1.msra.mxu0 0.0
    %1149 = vmatprep.subr.mxu0 0.0
    %1150 = vmatpush1.msra.mxu0 0.0
    %1151 = vmatprep.subr.mxu0 0.0
    %1152 = vmatpush1.msra.mxu0 0.0
    %1153 = vmatprep.subr.mxu0 0.0
    %1154 = vmatpush1.msra.mxu0 0.0
    %1155 = vmatprep.subr.mxu0 0.0
    %1156 = vmatpush1.msra.mxu0 0.0
    %1157 = vmatprep.subr.mxu0 0.0
    %1158 = vmatpush1.msra.mxu0 0.0
    %1159 = vmatprep.subr.mxu0 0.0
    %1160 = vmatpush1.msra.mxu0 0.0
    %1161 = vmatprep.subr.mxu0 0.0
    %1162 = vmatpush1.msra.mxu0 0.0
    %1163 = vmatprep.subr.mxu0 0.0
    %1164 = vmatpush1.msra.mxu0 %v557
    %1165 = vmatprep.subr.mxu0 0.0
    %1166 = vmatpush2.msra.mxu0 0.0
    %1167 = vmatprep.subr.mxu0 0.0
    %1168 = vmatpush2.msra.mxu0 0.0
    %1169 = vmatprep.subr.mxu0 0.0
    %1170 = vmatpush2.msra.mxu0 0.0
    %1171 = vmatprep.subr.mxu0 0.0
    %1172 = vmatpush2.msra.mxu0 0.0
    %1173 = vmatprep.subr.mxu0 0.0
    %1174 = vmatpush2.msra.mxu0 0.0
    %1175 = vmatprep.subr.mxu0 0.0
    %1176 = vmatpush2.msra.mxu0 0.0
    %1177 = vmatprep.subr.mxu0 0.0
    %1178 = vmatpush2.msra.mxu0 0.0
    %1179 = vmatprep.subr.mxu0 0.0
    %1180 = vmatpush2.msra.mxu0 0.0
    %1181 = vmatprep.subr.mxu0 0.0
    %1182 = vmatpush2.msra.mxu0 0.0
    %1183 = vmatprep.subr.mxu0 0.0
    %1184 = vmatpush2.msra.mxu0 0.0
    %1185 = vmatprep.subr.mxu0 0.0
    %1186 = vmatpush2.msra.mxu0 0.0
    %1187 = vmatprep.subr.mxu0 0.0
    %1188 = vmatpush2.msra.mxu0 0.0
    %1189 = vmatprep.subr.mxu0 0.0
    %1190 = vmatpush2.msra.mxu0 0.0
    %1191 = vmatprep.subr.mxu0 0.0
    %1192 = vmatpush2.msra.mxu0 0.0
    %1193 = vmatprep.subr.mxu0 0.0
    %1194 = vmatpush2.msra.mxu0 0.0
    %1195 = vmatprep.subr.mxu0 0.0
    %1196 = vmatpush2.msra.mxu0 0.0
    %1197 = vmatprep.mubr.f32.mxu0 0.0
    %1198 = vmatmul.mubr.f32.gmra.mxu0 %v1131
    %v1199 = vpop.f32.mrf.mxu0
    %v1200 = vadd.f32 0.0, %v1199
    %v1201 = vpop.f32.mrf.mxu0
    %1202 = vdwg.mxu0
    %v1203 = vcombine.low %v981, %v1127
    %v1204 = vcombine.high %v981, %v1127
    %v1206 = vunpack.c.l.s4 1983009808
    %v1207 = vunpack.c.0.s8 %v1206
    %v1208 = vlaneseq
    %v1209 = vshrl.u32 %v1208, 7
    %v1210 = vsub.s32 %v1207, %v1209
    %v1211 = vrot.slane %v1203, %v1210
    %v1213 = vunpack.c.l.s4 1983009808
    %v1214 = vunpack.c.0.s8 %v1213
    %v1215 = vlaneseq
    %v1216 = vshrl.u32 %v1215, 7
    %v1217 = vsub.s32 %v1214, %v1216
    %v1218 = vrot.slane %v1204, %v1217
    %v1219 = vcombine.low %v1054, %v1200
    %v1220 = vcombine.high %v1054, %v1200
    %v1222 = vunpack.c.l.s4 1983009808
    %v1223 = vunpack.c.0.s8 %v1222
    %v1224 = vlaneseq
    %v1225 = vshrl.u32 %v1224, 7
    %v1226 = vsub.s32 %v1223, %v1225
    %v1227 = vrot.slane %v1219, %v1226
    %v1229 = vunpack.c.l.s4 1983009808
    %v1230 = vunpack.c.0.s8 %v1229
    %v1231 = vlaneseq
    %v1232 = vshrl.u32 %v1231, 7
    %v1233 = vsub.s32 %v1230, %v1232
    %v1234 = vrot.slane %v1220, %v1233
    %v1235 = vcombine.low %v1211, %v1227
    %v1236 = vcombine.high %v1211, %v1227
    %v1238 = vunpack.c.l.s4 1934713408
    %v1239 = vunpack.c.0.s8 %v1238
    %v1240 = vlaneseq
    %v1241 = vshrl.u32 %v1240, 7
    %v1242 = vsub.s32 %v1239, %v1241
    %v1243 = vrot.slane %v1235, %v1242
    %v1245 = vunpack.c.l.s4 1934713408
    %v1246 = vunpack.c.0.s8 %v1245
    %v1247 = vlaneseq
    %v1248 = vshrl.u32 %v1247, 7
    %v1249 = vsub.s32 %v1246, %v1248
    %v1250 = vrot.slane %v1236, %v1249
    %v1251 = vcombine.low %v1218, %v1234
    %v1252 = vcombine.high %v1218, %v1234
    %v1254 = vunpack.c.l.s4 1934713408
    %v1255 = vunpack.c.0.s8 %v1254
    %v1256 = vlaneseq
    %v1257 = vshrl.u32 %v1256, 7
    %v1258 = vsub.s32 %v1255, %v1257
    %v1259 = vrot.slane %v1251, %v1258
    %v1261 = vunpack.c.l.s4 1934713408
    %v1262 = vunpack.c.0.s8 %v1261
    %v1263 = vlaneseq
    %v1264 = vshrl.u32 %v1263, 7
    %v1265 = vsub.s32 %v1262, %v1264
    %v1266 = vrot.slane %v1252, %v1265
    %v1267 = vcombine.high %v1243, 0.0
    %v1268 = vcombine.high %v1250, 0.0
    %v1269 = vcombine.high %v1259, 0.0
    %v1270 = vcombine.high %v1266, 0.0
    %v1271 = vcombine.low %v1243, %v1250
    %v1273 = vunpack.c.l.s4 1983009808
    %v1274 = vunpack.c.0.s8 %v1273
    %v1275 = vlaneseq
    %v1276 = vshrl.u32 %v1275, 7
    %v1277 = vsub.s32 %v1274, %v1276
    %v1278 = vrot.slane %v1271, %v1277
    %v1279 = vcombine.low %v1267, %v1268
    %v1281 = vunpack.c.l.s4 1983009808
    %v1282 = vunpack.c.0.s8 %v1281
    %v1283 = vlaneseq
    %v1284 = vshrl.u32 %v1283, 7
    %v1285 = vsub.s32 %v1282, %v1284
    %v1286 = vrot.slane %v1279, %v1285
    %v1287 = vcombine.low %v1259, %v1266
    %v1289 = vunpack.c.l.s4 1983009808
    %v1290 = vunpack.c.0.s8 %v1289
    %v1291 = vlaneseq
    %v1292 = vshrl.u32 %v1291, 7
    %v1293 = vsub.s32 %v1290, %v1292
    %v1294 = vrot.slane %v1287, %v1293
    %v1295 = vcombine.low %v1269, %v1270
    %v1297 = vunpack.c.l.s4 1983009808
    %v1298 = vunpack.c.0.s8 %v1297
    %v1299 = vlaneseq
    %v1300 = vshrl.u32 %v1299, 7
    %v1301 = vsub.s32 %v1298, %v1300
    %v1302 = vrot.slane %v1295, %v1301
    %v1303 = vcombine.low %v1278, %v1286
    %v1304 = vcombine.high %v1278, %v1286
    %v1306 = vunpack.c.l.s4 1934713408
    %v1307 = vunpack.c.0.s8 %v1306
    %v1308 = vlaneseq
    %v1309 = vshrl.u32 %v1308, 7
    %v1310 = vsub.s32 %v1307, %v1309
    %v1311 = vrot.slane %v1303, %v1310
    %v1313 = vunpack.c.l.s4 1934713408
    %v1314 = vunpack.c.0.s8 %v1313
    %v1315 = vlaneseq
    %v1316 = vshrl.u32 %v1315, 7
    %v1317 = vsub.s32 %v1314, %v1316
    %v1318 = vrot.slane %v1304, %v1317
    %v1319 = vcombine.low %v1294, %v1302
    %v1320 = vcombine.high %v1294, %v1302
    %v1322 = vunpack.c.l.s4 1934713408
    %v1323 = vunpack.c.0.s8 %v1322
    %v1324 = vlaneseq
    %v1325 = vshrl.u32 %v1324, 7
    %v1326 = vsub.s32 %v1323, %v1325
    %v1327 = vrot.slane %v1319, %v1326
    %v1329 = vunpack.c.l.s4 1934713408
    %v1330 = vunpack.c.0.s8 %v1329
    %v1331 = vlaneseq
    %v1332 = vshrl.u32 %v1331, 7
    %v1333 = vsub.s32 %v1330, %v1332
    %v1334 = vrot.slane %v1320, %v1333
    %v1335 = vcombine.low %v1311, %v1327
    %v1336 = vcombine.high %v1311, %v1327
    %v1337 = vcombine.low %v1318, %v1334
    %v1338 = vcombine.high %v1318, %v1334
    %1340 = vrot.lane.b32.xlu0 %v1336, 8
    %v1341 = vpop.permute.xlu0 %1340
    %1344 = vrot.lane.b32.xlu0 %v1337, 16
    %v1345 = vpop.permute.xlu0 %1344
    %1348 = vrot.lane.b32.xlu0 %v1338, 24
    %v1349 = vpop.permute.xlu0 %1348
    %v1351 = vsel %vm558, %v1335, %v1341
    %vm1352 = vcmask 130048
    %v1353 = vsel %vm1352, %v1351, %v1345
    %vm1354 = vcmask 195584
    %v1355 = vsel %vm1354, %v1353, %v1349
    %1357 = vrot.lane.b32.xlu0 %v160, 120
    %v1358 = vpop.permute.xlu0 %1357
    %1360 = vrot.lane.b32.xlu0 %v160, 112
    %v1361 = vpop.permute.xlu0 %1360
    %1363 = vrot.lane.b32.xlu0 %v160, 104
    %v1364 = vpop.permute.xlu0 %1363
    %v1366 = vcombine.low %v160, %v1361
    %v1367 = vcombine.high %v160, %v1361
    %v1369 = vunpack.c.l.s4 1983009808
    %v1370 = vunpack.c.0.s8 %v1369
    %v1371 = vlaneseq
    %v1372 = vshrl.u32 %v1371, 7
    %v1373 = vsub.s32 %v1370, %v1372
    %v1374 = vrot.slane %v1366, %v1373
    %v1376 = vunpack.c.l.s4 1983009808
    %v1377 = vunpack.c.0.s8 %v1376
    %v1378 = vlaneseq
    %v1379 = vshrl.u32 %v1378, 7
    %v1380 = vsub.s32 %v1377, %v1379
    %v1381 = vrot.slane %v1367, %v1380
    %v1382 = vcombine.low %v1358, %v1364
    %v1383 = vcombine.high %v1358, %v1364
    %v1385 = vunpack.c.l.s4 1983009808
    %v1386 = vunpack.c.0.s8 %v1385
    %v1387 = vlaneseq
    %v1388 = vshrl.u32 %v1387, 7
    %v1389 = vsub.s32 %v1386, %v1388
    %v1390 = vrot.slane %v1382, %v1389
    %v1392 = vunpack.c.l.s4 1983009808
    %v1393 = vunpack.c.0.s8 %v1392
    %v1394 = vlaneseq
    %v1395 = vshrl.u32 %v1394, 7
    %v1396 = vsub.s32 %v1393, %v1395
    %v1397 = vrot.slane %v1383, %v1396
    %v1398 = vcombine.low %v1374, %v1390
    %v1399 = vcombine.high %v1374, %v1390
    %v1401 = vunpack.c.l.s4 1934713408
    %v1402 = vunpack.c.0.s8 %v1401
    %v1403 = vlaneseq
    %v1404 = vshrl.u32 %v1403, 7
    %v1405 = vsub.s32 %v1402, %v1404
    %v1406 = vrot.slane %v1398, %v1405
    %v1408 = vunpack.c.l.s4 1934713408
    %v1409 = vunpack.c.0.s8 %v1408
    %v1410 = vlaneseq
    %v1411 = vshrl.u32 %v1410, 7
    %v1412 = vsub.s32 %v1409, %v1411
    %v1413 = vrot.slane %v1399, %v1412
    %v1414 = vcombine.low %v1381, %v1397
    %v1415 = vcombine.high %v1381, %v1397
    %v1417 = vunpack.c.l.s4 1934713408
    %v1418 = vunpack.c.0.s8 %v1417
    %v1419 = vlaneseq
    %v1420 = vshrl.u32 %v1419, 7
    %v1421 = vsub.s32 %v1418, %v1420
    %v1422 = vrot.slane %v1414, %v1421
    %v1424 = vunpack.c.l.s4 1934713408
    %v1425 = vunpack.c.0.s8 %v1424
    %v1426 = vlaneseq
    %v1427 = vshrl.u32 %v1426, 7
    %v1428 = vsub.s32 %v1425, %v1427
    %v1429 = vrot.slane %v1415, %v1428
    %v1430 = vcombine.high %v1406, 0.0
    %v1431 = vcombine.high %v1413, 0.0
    %v1432 = vcombine.high %v1422, 0.0
    %v1433 = vcombine.high %v1429, 0.0
    %v1434 = vcombine.low %v1406, %v1413
    %v1436 = vunpack.c.l.s4 1983009808
    %v1437 = vunpack.c.0.s8 %v1436
    %v1438 = vlaneseq
    %v1439 = vshrl.u32 %v1438, 7
    %v1440 = vsub.s32 %v1437, %v1439
    %v1441 = vrot.slane %v1434, %v1440
    %v1442 = vcombine.low %v1430, %v1431
    %v1444 = vunpack.c.l.s4 1983009808
    %v1445 = vunpack.c.0.s8 %v1444
    %v1446 = vlaneseq
    %v1447 = vshrl.u32 %v1446, 7
    %v1448 = vsub.s32 %v1445, %v1447
    %v1449 = vrot.slane %v1442, %v1448
    %v1450 = vcombine.low %v1422, %v1429
    %v1452 = vunpack.c.l.s4 1983009808
    %v1453 = vunpack.c.0.s8 %v1452
    %v1454 = vlaneseq
    %v1455 = vshrl.u32 %v1454, 7
    %v1456 = vsub.s32 %v1453, %v1455
    %v1457 = vrot.slane %v1450, %v1456
    %v1458 = vcombine.low %v1432, %v1433
    %v1460 = vunpack.c.l.s4 1983009808
    %v1461 = vunpack.c.0.s8 %v1460
    %v1462 = vlaneseq
    %v1463 = vshrl.u32 %v1462, 7
    %v1464 = vsub.s32 %v1461, %v1463
    %v1465 = vrot.slane %v1458, %v1464
    %v1466 = vcombine.low %v1441, %v1449
    %v1467 = vcombine.high %v1441, %v1449
    %v1469 = vunpack.c.l.s4 1934713408
    %v1470 = vunpack.c.0.s8 %v1469
    %v1471 = vlaneseq
    %v1472 = vshrl.u32 %v1471, 7
    %v1473 = vsub.s32 %v1470, %v1472
    %v1474 = vrot.slane %v1466, %v1473
    %v1476 = vunpack.c.l.s4 1934713408
    %v1477 = vunpack.c.0.s8 %v1476
    %v1478 = vlaneseq
    %v1479 = vshrl.u32 %v1478, 7
    %v1480 = vsub.s32 %v1477, %v1479
    %v1481 = vrot.slane %v1467, %v1480
    %v1482 = vcombine.low %v1457, %v1465
    %v1483 = vcombine.high %v1457, %v1465
    %v1485 = vunpack.c.l.s4 1934713408
    %v1486 = vunpack.c.0.s8 %v1485
    %v1487 = vlaneseq
    %v1488 = vshrl.u32 %v1487, 7
    %v1489 = vsub.s32 %v1486, %v1488
    %v1490 = vrot.slane %v1482, %v1489
    %v1492 = vunpack.c.l.s4 1934713408
    %v1493 = vunpack.c.0.s8 %v1492
    %v1494 = vlaneseq
    %v1495 = vshrl.u32 %v1494, 7
    %v1496 = vsub.s32 %v1493, %v1495
    %v1497 = vrot.slane %v1483, %v1496
    %v1498 = vcombine.low %v1474, %v1490
    %v1499 = vcombine.high %v1474, %v1490
    %v1500 = vcombine.low %v1481, %v1497
    %v1501 = vcombine.high %v1481, %v1497
    %1502 = vrot.lane.b32.xlu0 %v160, 96
    %v1503 = vpop.permute.xlu0 %1502
    %1504 = vrot.lane.b32.xlu0 %v1358, 96
    %v1505 = vpop.permute.xlu0 %1504
    %v1508 = vcombine.high %v1503, 0.0
    %v1510 = vunpack.c.l.s4 1983009808
    %v1511 = vunpack.c.0.s8 %v1510
    %v1512 = vlaneseq
    %v1513 = vshrl.u32 %v1512, 7
    %v1514 = vsub.s32 %v1511, %v1513
    %v1515 = vrot.slane %v1503, %v1514
    %v1517 = vunpack.c.l.s4 1983009808
    %v1518 = vunpack.c.0.s8 %v1517
    %v1519 = vlaneseq
    %v1520 = vshrl.u32 %v1519, 7
    %v1521 = vsub.s32 %v1518, %v1520
    %v1522 = vrot.slane %v1508, %v1521
    %v1523 = vcombine.high %v1505, 0.0
    %v1525 = vunpack.c.l.s4 1983009808
    %v1526 = vunpack.c.0.s8 %v1525
    %v1527 = vlaneseq
    %v1528 = vshrl.u32 %v1527, 7
    %v1529 = vsub.s32 %v1526, %v1528
    %v1530 = vrot.slane %v1505, %v1529
    %v1532 = vunpack.c.l.s4 1983009808
    %v1533 = vunpack.c.0.s8 %v1532
    %v1534 = vlaneseq
    %v1535 = vshrl.u32 %v1534, 7
    %v1536 = vsub.s32 %v1533, %v1535
    %v1537 = vrot.slane %v1523, %v1536
    %v1538 = vcombine.low %v1515, %v1530
    %v1539 = vcombine.high %v1515, %v1530
    %v1541 = vunpack.c.l.s4 1934713408
    %v1542 = vunpack.c.0.s8 %v1541
    %v1543 = vlaneseq
    %v1544 = vshrl.u32 %v1543, 7
    %v1545 = vsub.s32 %v1542, %v1544
    %v1546 = vrot.slane %v1538, %v1545
    %v1548 = vunpack.c.l.s4 1934713408
    %v1549 = vunpack.c.0.s8 %v1548
    %v1550 = vlaneseq
    %v1551 = vshrl.u32 %v1550, 7
    %v1552 = vsub.s32 %v1549, %v1551
    %v1553 = vrot.slane %v1539, %v1552
    %v1554 = vcombine.low %v1522, %v1537
    %v1555 = vcombine.high %v1522, %v1537
    %v1557 = vunpack.c.l.s4 1934713408
    %v1558 = vunpack.c.0.s8 %v1557
    %v1559 = vlaneseq
    %v1560 = vshrl.u32 %v1559, 7
    %v1561 = vsub.s32 %v1558, %v1560
    %v1562 = vrot.slane %v1554, %v1561
    %v1564 = vunpack.c.l.s4 1934713408
    %v1565 = vunpack.c.0.s8 %v1564
    %v1566 = vlaneseq
    %v1567 = vshrl.u32 %v1566, 7
    %v1568 = vsub.s32 %v1565, %v1567
    %v1569 = vrot.slane %v1555, %v1568
    %v1570 = vcombine.high %v1546, 0.0
    %v1571 = vcombine.high %v1553, 0.0
    %v1572 = vcombine.high %v1562, 0.0
    %v1573 = vcombine.high %v1569, 0.0
    %v1574 = vcombine.low %v1546, %v1553
    %v1576 = vunpack.c.l.s4 1983009808
    %v1577 = vunpack.c.0.s8 %v1576
    %v1578 = vlaneseq
    %v1579 = vshrl.u32 %v1578, 7
    %v1580 = vsub.s32 %v1577, %v1579
    %v1581 = vrot.slane %v1574, %v1580
    %v1582 = vcombine.low %v1570, %v1571
    %v1584 = vunpack.c.l.s4 1983009808
    %v1585 = vunpack.c.0.s8 %v1584
    %v1586 = vlaneseq
    %v1587 = vshrl.u32 %v1586, 7
    %v1588 = vsub.s32 %v1585, %v1587
    %v1589 = vrot.slane %v1582, %v1588
    %v1590 = vcombine.low %v1562, %v1569
    %v1592 = vunpack.c.l.s4 1983009808
    %v1593 = vunpack.c.0.s8 %v1592
    %v1594 = vlaneseq
    %v1595 = vshrl.u32 %v1594, 7
    %v1596 = vsub.s32 %v1593, %v1595
    %v1597 = vrot.slane %v1590, %v1596
    %v1598 = vcombine.low %v1572, %v1573
    %v1600 = vunpack.c.l.s4 1983009808
    %v1601 = vunpack.c.0.s8 %v1600
    %v1602 = vlaneseq
    %v1603 = vshrl.u32 %v1602, 7
    %v1604 = vsub.s32 %v1601, %v1603
    %v1605 = vrot.slane %v1598, %v1604
    %v1606 = vcombine.low %v1581, %v1589
    %v1608 = vunpack.c.l.s4 1934713408
    %v1609 = vunpack.c.0.s8 %v1608
    %v1610 = vlaneseq
    %v1611 = vshrl.u32 %v1610, 7
    %v1612 = vsub.s32 %v1609, %v1611
    %v1613 = vrot.slane %v1606, %v1612
    %v1614 = vcombine.low %v1597, %v1605
    %v1616 = vunpack.c.l.s4 1934713408
    %v1617 = vunpack.c.0.s8 %v1616
    %v1618 = vlaneseq
    %v1619 = vshrl.u32 %v1618, 7
    %v1620 = vsub.s32 %v1617, %v1619
    %v1621 = vrot.slane %v1614, %v1620
    %v1622 = vcombine.low %v1613, %v1621
    %v1623 = vcombine.high %v1613, %v1621
    %1624 = vrot.lane.b32.xlu0 %v160, 80
    %v1625 = vpop.permute.xlu0 %1624
    %1626 = vrot.lane.b32.xlu0 %v1358, 80
    %v1627 = vpop.permute.xlu0 %1626
    %v1630 = vcombine.high %v1625, 0.0
    %v1632 = vunpack.c.l.s4 1983009808
    %v1633 = vunpack.c.0.s8 %v1632
    %v1634 = vlaneseq
    %v1635 = vshrl.u32 %v1634, 7
    %v1636 = vsub.s32 %v1633, %v1635
    %v1637 = vrot.slane %v1625, %v1636
    %v1639 = vunpack.c.l.s4 1983009808
    %v1640 = vunpack.c.0.s8 %v1639
    %v1641 = vlaneseq
    %v1642 = vshrl.u32 %v1641, 7
    %v1643 = vsub.s32 %v1640, %v1642
    %v1644 = vrot.slane %v1630, %v1643
    %v1645 = vcombine.high %v1627, 0.0
    %v1647 = vunpack.c.l.s4 1983009808
    %v1648 = vunpack.c.0.s8 %v1647
    %v1649 = vlaneseq
    %v1650 = vshrl.u32 %v1649, 7
    %v1651 = vsub.s32 %v1648, %v1650
    %v1652 = vrot.slane %v1627, %v1651
    %v1654 = vunpack.c.l.s4 1983009808
    %v1655 = vunpack.c.0.s8 %v1654
    %v1656 = vlaneseq
    %v1657 = vshrl.u32 %v1656, 7
    %v1658 = vsub.s32 %v1655, %v1657
    %v1659 = vrot.slane %v1645, %v1658
    %v1660 = vcombine.low %v1637, %v1652
    %v1661 = vcombine.high %v1637, %v1652
    %v1663 = vunpack.c.l.s4 1934713408
    %v1664 = vunpack.c.0.s8 %v1663
    %v1665 = vlaneseq
    %v1666 = vshrl.u32 %v1665, 7
    %v1667 = vsub.s32 %v1664, %v1666
    %v1668 = vrot.slane %v1660, %v1667
    %v1670 = vunpack.c.l.s4 1934713408
    %v1671 = vunpack.c.0.s8 %v1670
    %v1672 = vlaneseq
    %v1673 = vshrl.u32 %v1672, 7
    %v1674 = vsub.s32 %v1671, %v1673
    %v1675 = vrot.slane %v1661, %v1674
    %v1676 = vcombine.low %v1644, %v1659
    %v1677 = vcombine.high %v1644, %v1659
    %v1679 = vunpack.c.l.s4 1934713408
    %v1680 = vunpack.c.0.s8 %v1679
    %v1681 = vlaneseq
    %v1682 = vshrl.u32 %v1681, 7
    %v1683 = vsub.s32 %v1680, %v1682
    %v1684 = vrot.slane %v1676, %v1683
    %v1686 = vunpack.c.l.s4 1934713408
    %v1687 = vunpack.c.0.s8 %v1686
    %v1688 = vlaneseq
    %v1689 = vshrl.u32 %v1688, 7
    %v1690 = vsub.s32 %v1687, %v1689
    %v1691 = vrot.slane %v1677, %v1690
    %v1692 = vcombine.high %v1668, 0.0
    %v1693 = vcombine.high %v1675, 0.0
    %v1694 = vcombine.high %v1684, 0.0
    %v1695 = vcombine.high %v1691, 0.0
    %v1696 = vcombine.low %v1668, %v1675
    %v1698 = vunpack.c.l.s4 1983009808
    %v1699 = vunpack.c.0.s8 %v1698
    %v1700 = vlaneseq
    %v1701 = vshrl.u32 %v1700, 7
    %v1702 = vsub.s32 %v1699, %v1701
    %v1703 = vrot.slane %v1696, %v1702
    %v1704 = vcombine.low %v1692, %v1693
    %v1706 = vunpack.c.l.s4 1983009808
    %v1707 = vunpack.c.0.s8 %v1706
    %v1708 = vlaneseq
    %v1709 = vshrl.u32 %v1708, 7
    %v1710 = vsub.s32 %v1707, %v1709
    %v1711 = vrot.slane %v1704, %v1710
    %v1712 = vcombine.low %v1684, %v1691
    %v1714 = vunpack.c.l.s4 1983009808
    %v1715 = vunpack.c.0.s8 %v1714
    %v1716 = vlaneseq
    %v1717 = vshrl.u32 %v1716, 7
    %v1718 = vsub.s32 %v1715, %v1717
    %v1719 = vrot.slane %v1712, %v1718
    %v1720 = vcombine.low %v1694, %v1695
    %v1722 = vunpack.c.l.s4 1983009808
    %v1723 = vunpack.c.0.s8 %v1722
    %v1724 = vlaneseq
    %v1725 = vshrl.u32 %v1724, 7
    %v1726 = vsub.s32 %v1723, %v1725
    %v1727 = vrot.slane %v1720, %v1726
    %v1728 = vcombine.low %v1703, %v1711
    %v1730 = vunpack.c.l.s4 1934713408
    %v1731 = vunpack.c.0.s8 %v1730
    %v1732 = vlaneseq
    %v1733 = vshrl.u32 %v1732, 7
    %v1734 = vsub.s32 %v1731, %v1733
    %v1735 = vrot.slane %v1728, %v1734
    %v1736 = vcombine.low %v1719, %v1727
    %v1738 = vunpack.c.l.s4 1934713408
    %v1739 = vunpack.c.0.s8 %v1738
    %v1740 = vlaneseq
    %v1741 = vshrl.u32 %v1740, 7
    %v1742 = vsub.s32 %v1739, %v1741
    %v1743 = vrot.slane %v1736, %v1742
    %v1744 = vcombine.low %v1735, %v1743
    %v1745 = vcombine.high %v1735, %v1743
    %v1747 = vsel %vm558, %v1498, 0
    %v1750 = vsel %vm558, %v1622, 0
    %1752 = vmatprep.subr.mxu0 0.0
    %1753 = vmatpush1.xpose.msra.mxu0 0.0
    %1754 = vmatprep.subr.mxu0 0.0
    %1755 = vmatpush1.xpose.msra.mxu0 0.0
    %1756 = vmatprep.subr.mxu0 0.0
    %1757 = vmatpush1.xpose.msra.mxu0 0.0
    %1758 = vmatprep.subr.mxu0 0.0
    %1759 = vmatpush1.xpose.msra.mxu0 0.0
    %1760 = vmatprep.subr.mxu0 0.0
    %1761 = vmatpush1.xpose.msra.mxu0 0.0
    %1762 = vmatprep.subr.mxu0 0.0
    %1763 = vmatpush1.xpose.msra.mxu0 0.0
    %1764 = vmatprep.subr.mxu0 0.0
    %1765 = vmatpush1.xpose.msra.mxu0 0.0
    %1766 = vmatprep.subr.mxu0 0.0
    %1767 = vmatpush1.xpose.msra.mxu0 0.0
    %1768 = vmatprep.subr.mxu0 0.0
    %1769 = vmatpush1.xpose.msra.mxu0 0.0
    %1770 = vmatprep.subr.mxu0 0.0
    %1771 = vmatpush1.xpose.msra.mxu0 0.0
    %1772 = vmatprep.subr.mxu0 0.0
    %1773 = vmatpush1.xpose.msra.mxu0 0.0
    %1774 = vmatprep.subr.mxu0 0.0
    %1775 = vmatpush1.xpose.msra.mxu0 0.0
    %1776 = vmatprep.subr.mxu0 0.0
    %1777 = vmatpush1.xpose.msra.mxu0 0.0
    %1778 = vmatprep.subr.mxu0 0.0
    %1779 = vmatpush1.xpose.msra.mxu0 0.0
    %1780 = vmatprep.subr.mxu0 0.0
    %1781 = vmatpush1.xpose.msra.mxu0 0.0
    %1782 = vmatprep.subr.mxu0 0.0
    %1783 = vmatpush1.xpose.msra.mxu0 %v1750
    %1784 = vmatprep.subr.mxu0 0.0
    %1785 = vmatpush2.xpose.msra.mxu0 0.0
    %1786 = vmatprep.subr.mxu0 0.0
    %1787 = vmatpush2.xpose.msra.mxu0 0.0
    %1788 = vmatprep.subr.mxu0 0.0
    %1789 = vmatpush2.xpose.msra.mxu0 0.0
    %1790 = vmatprep.subr.mxu0 0.0
    %1791 = vmatpush2.xpose.msra.mxu0 0.0
    %1792 = vmatprep.subr.mxu0 0.0
    %1793 = vmatpush2.xpose.msra.mxu0 0.0
    %1794 = vmatprep.subr.mxu0 0.0
    %1795 = vmatpush2.xpose.msra.mxu0 0.0
    %1796 = vmatprep.subr.mxu0 0.0
    %1797 = vmatpush2.xpose.msra.mxu0 0.0
    %1798 = vmatprep.subr.mxu0 0.0
    %1799 = vmatpush2.xpose.msra.mxu0 0.0
    %1800 = vmatprep.subr.mxu0 0.0
    %1801 = vmatpush2.xpose.msra.mxu0 0.0
    %1802 = vmatprep.subr.mxu0 0.0
    %1803 = vmatpush2.xpose.msra.mxu0 0.0
    %1804 = vmatprep.subr.mxu0 0.0
    %1805 = vmatpush2.xpose.msra.mxu0 0.0
    %1806 = vmatprep.subr.mxu0 0.0
    %1807 = vmatpush2.xpose.msra.mxu0 0.0
    %1808 = vmatprep.subr.mxu0 0.0
    %1809 = vmatpush2.xpose.msra.mxu0 0.0
    %1810 = vmatprep.subr.mxu0 0.0
    %1811 = vmatpush2.xpose.msra.mxu0 0.0
    %1812 = vmatprep.subr.mxu0 0.0
    %1813 = vmatpush2.xpose.msra.mxu0 0.0
    %1814 = vmatprep.subr.mxu0 0.0
    %1815 = vmatpush2.xpose.msra.mxu0 0.0
    %1816 = vmatprep.mubr.f32.mxu0 0.0
    %1817 = vmatmul.mubr.f32.gmra.mxu0 %v1747
    %v1818 = vpop.f32.mrf.mxu0
    %v1819 = vadd.f32 0.0, %v1818
    %v1820 = vpop.f32.mrf.mxu0
    %1821 = vdwg.mxu0
    %v1823 = vsel %vm558, %v1499, 0
    %1825 = vmatprep.subr.mxu0 0.0
    %1826 = vmatpush1.xpose.msra.mxu0 0.0
    %1827 = vmatprep.subr.mxu0 0.0
    %1828 = vmatpush1.xpose.msra.mxu0 0.0
    %1829 = vmatprep.subr.mxu0 0.0
    %1830 = vmatpush1.xpose.msra.mxu0 0.0
    %1831 = vmatprep.subr.mxu0 0.0
    %1832 = vmatpush1.xpose.msra.mxu0 0.0
    %1833 = vmatprep.subr.mxu0 0.0
    %1834 = vmatpush1.xpose.msra.mxu0 0.0
    %1835 = vmatprep.subr.mxu0 0.0
    %1836 = vmatpush1.xpose.msra.mxu0 0.0
    %1837 = vmatprep.subr.mxu0 0.0
    %1838 = vmatpush1.xpose.msra.mxu0 0.0
    %1839 = vmatprep.subr.mxu0 0.0
    %1840 = vmatpush1.xpose.msra.mxu0 0.0
    %1841 = vmatprep.subr.mxu0 0.0
    %1842 = vmatpush1.xpose.msra.mxu0 0.0
    %1843 = vmatprep.subr.mxu0 0.0
    %1844 = vmatpush1.xpose.msra.mxu0 0.0
    %1845 = vmatprep.subr.mxu0 0.0
    %1846 = vmatpush1.xpose.msra.mxu0 0.0
    %1847 = vmatprep.subr.mxu0 0.0
    %1848 = vmatpush1.xpose.msra.mxu0 0.0
    %1849 = vmatprep.subr.mxu0 0.0
    %1850 = vmatpush1.xpose.msra.mxu0 0.0
    %1851 = vmatprep.subr.mxu0 0.0
    %1852 = vmatpush1.xpose.msra.mxu0 0.0
    %1853 = vmatprep.subr.mxu0 0.0
    %1854 = vmatpush1.xpose.msra.mxu0 0.0
    %1855 = vmatprep.subr.mxu0 0.0
    %1856 = vmatpush1.xpose.msra.mxu0 %v1750
    %1857 = vmatprep.subr.mxu0 0.0
    %1858 = vmatpush2.xpose.msra.mxu0 0.0
    %1859 = vmatprep.subr.mxu0 0.0
    %1860 = vmatpush2.xpose.msra.mxu0 0.0
    %1861 = vmatprep.subr.mxu0 0.0
    %1862 = vmatpush2.xpose.msra.mxu0 0.0
    %1863 = vmatprep.subr.mxu0 0.0
    %1864 = vmatpush2.xpose.msra.mxu0 0.0
    %1865 = vmatprep.subr.mxu0 0.0
    %1866 = vmatpush2.xpose.msra.mxu0 0.0
    %1867 = vmatprep.subr.mxu0 0.0
    %1868 = vmatpush2.xpose.msra.mxu0 0.0
    %1869 = vmatprep.subr.mxu0 0.0
    %1870 = vmatpush2.xpose.msra.mxu0 0.0
    %1871 = vmatprep.subr.mxu0 0.0
    %1872 = vmatpush2.xpose.msra.mxu0 0.0
    %1873 = vmatprep.subr.mxu0 0.0
    %1874 = vmatpush2.xpose.msra.mxu0 0.0
    %1875 = vmatprep.subr.mxu0 0.0
    %1876 = vmatpush2.xpose.msra.mxu0 0.0
    %1877 = vmatprep.subr.mxu0 0.0
    %1878 = vmatpush2.xpose.msra.mxu0 0.0
    %1879 = vmatprep.subr.mxu0 0.0
    %1880 = vmatpush2.xpose.msra.mxu0 0.0
    %1881 = vmatprep.subr.mxu0 0.0
    %1882 = vmatpush2.xpose.msra.mxu0 0.0
    %1883 = vmatprep.subr.mxu0 0.0
    %1884 = vmatpush2.xpose.msra.mxu0 0.0
    %1885 = vmatprep.subr.mxu0 0.0
    %1886 = vmatpush2.xpose.msra.mxu0 0.0
    %1887 = vmatprep.subr.mxu0 0.0
    %1888 = vmatpush2.xpose.msra.mxu0 0.0
    %1889 = vmatprep.mubr.f32.mxu0 0.0
    %1890 = vmatmul.mubr.f32.gmra.mxu0 %v1823
    %v1891 = vpop.f32.mrf.mxu0
    %v1892 = vadd.f32 0.0, %v1891
    %v1893 = vpop.f32.mrf.mxu0
    %1894 = vdwg.mxu0
    %v1896 = vsel %vm558, %v1500, 0
    %v1899 = vsel %vm558, %v1623, 0
    %1901 = vmatprep.subr.mxu0 0.0
    %1902 = vmatpush1.xpose.msra.mxu0 0.0
    %1903 = vmatprep.subr.mxu0 0.0
    %1904 = vmatpush1.xpose.msra.mxu0 0.0
    %1905 = vmatprep.subr.mxu0 0.0
    %1906 = vmatpush1.xpose.msra.mxu0 0.0
    %1907 = vmatprep.subr.mxu0 0.0
    %1908 = vmatpush1.xpose.msra.mxu0 0.0
    %1909 = vmatprep.subr.mxu0 0.0
    %1910 = vmatpush1.xpose.msra.mxu0 0.0
    %1911 = vmatprep.subr.mxu0 0.0
    %1912 = vmatpush1.xpose.msra.mxu0 0.0
    %1913 = vmatprep.subr.mxu0 0.0
    %1914 = vmatpush1.xpose.msra.mxu0 0.0
    %1915 = vmatprep.subr.mxu0 0.0
    %1916 = vmatpush1.xpose.msra.mxu0 0.0
    %1917 = vmatprep.subr.mxu0 0.0
    %1918 = vmatpush1.xpose.msra.mxu0 0.0
    %1919 = vmatprep.subr.mxu0 0.0
    %1920 = vmatpush1.xpose.msra.mxu0 0.0
    %1921 = vmatprep.subr.mxu0 0.0
    %1922 = vmatpush1.xpose.msra.mxu0 0.0
    %1923 = vmatprep.subr.mxu0 0.0
    %1924 = vmatpush1.xpose.msra.mxu0 0.0
    %1925 = vmatprep.subr.mxu0 0.0
    %1926 = vmatpush1.xpose.msra.mxu0 0.0
    %1927 = vmatprep.subr.mxu0 0.0
    %1928 = vmatpush1.xpose.msra.mxu0 0.0
    %1929 = vmatprep.subr.mxu0 0.0
    %1930 = vmatpush1.xpose.msra.mxu0 0.0
    %1931 = vmatprep.subr.mxu0 0.0
    %1932 = vmatpush1.xpose.msra.mxu0 %v1899
    %1933 = vmatprep.subr.mxu0 0.0
    %1934 = vmatpush2.xpose.msra.mxu0 0.0
    %1935 = vmatprep.subr.mxu0 0.0
    %1936 = vmatpush2.xpose.msra.mxu0 0.0
    %1937 = vmatprep.subr.mxu0 0.0
    %1938 = vmatpush2.xpose.msra.mxu0 0.0
    %1939 = vmatprep.subr.mxu0 0.0
    %1940 = vmatpush2.xpose.msra.mxu0 0.0
    %1941 = vmatprep.subr.mxu0 0.0
    %1942 = vmatpush2.xpose.msra.mxu0 0.0
    %1943 = vmatprep.subr.mxu0 0.0
    %1944 = vmatpush2.xpose.msra.mxu0 0.0
    %1945 = vmatprep.subr.mxu0 0.0
    %1946 = vmatpush2.xpose.msra.mxu0 0.0
    %1947 = vmatprep.subr.mxu0 0.0
    %1948 = vmatpush2.xpose.msra.mxu0 0.0
    %1949 = vmatprep.subr.mxu0 0.0
    %1950 = vmatpush2.xpose.msra.mxu0 0.0
    %1951 = vmatprep.subr.mxu0 0.0
    %1952 = vmatpush2.xpose.msra.mxu0 0.0
    %1953 = vmatprep.subr.mxu0 0.0
    %1954 = vmatpush2.xpose.msra.mxu0 0.0
    %1955 = vmatprep.subr.mxu0 0.0
    %1956 = vmatpush2.xpose.msra.mxu0 0.0
    %1957 = vmatprep.subr.mxu0 0.0
    %1958 = vmatpush2.xpose.msra.mxu0 0.0
    %1959 = vmatprep.subr.mxu0 0.0
    %1960 = vmatpush2.xpose.msra.mxu0 0.0
    %1961 = vmatprep.subr.mxu0 0.0
    %1962 = vmatpush2.xpose.msra.mxu0 0.0
    %1963 = vmatprep.subr.mxu0 0.0
    %1964 = vmatpush2.xpose.msra.mxu0 0.0
    %1965 = vmatprep.mubr.f32.mxu0 0.0
    %1966 = vmatmul.mubr.f32.gmra.mxu0 %v1896
    %v1967 = vpop.f32.mrf.mxu0
    %v1968 = vadd.f32 0.0, %v1967
    %v1969 = vpop.f32.mrf.mxu0
    %1970 = vdwg.mxu0
    %v1972 = vsel %vm558, %v1501, 0
    %1974 = vmatprep.subr.mxu0 0.0
    %1975 = vmatpush1.xpose.msra.mxu0 0.0
    %1976 = vmatprep.subr.mxu0 0.0
    %1977 = vmatpush1.xpose.msra.mxu0 0.0
    %1978 = vmatprep.subr.mxu0 0.0
    %1979 = vmatpush1.xpose.msra.mxu0 0.0
    %1980 = vmatprep.subr.mxu0 0.0
    %1981 = vmatpush1.xpose.msra.mxu0 0.0
    %1982 = vmatprep.subr.mxu0 0.0
    %1983 = vmatpush1.xpose.msra.mxu0 0.0
    %1984 = vmatprep.subr.mxu0 0.0
    %1985 = vmatpush1.xpose.msra.mxu0 0.0
    %1986 = vmatprep.subr.mxu0 0.0
    %1987 = vmatpush1.xpose.msra.mxu0 0.0
    %1988 = vmatprep.subr.mxu0 0.0
    %1989 = vmatpush1.xpose.msra.mxu0 0.0
    %1990 = vmatprep.subr.mxu0 0.0
    %1991 = vmatpush1.xpose.msra.mxu0 0.0
    %1992 = vmatprep.subr.mxu0 0.0
    %1993 = vmatpush1.xpose.msra.mxu0 0.0
    %1994 = vmatprep.subr.mxu0 0.0
    %1995 = vmatpush1.xpose.msra.mxu0 0.0
    %1996 = vmatprep.subr.mxu0 0.0
    %1997 = vmatpush1.xpose.msra.mxu0 0.0
    %1998 = vmatprep.subr.mxu0 0.0
    %1999 = vmatpush1.xpose.msra.mxu0 0.0
    %2000 = vmatprep.subr.mxu0 0.0
    %2001 = vmatpush1.xpose.msra.mxu0 0.0
    %2002 = vmatprep.subr.mxu0 0.0
    %2003 = vmatpush1.xpose.msra.mxu0 0.0
    %2004 = vmatprep.subr.mxu0 0.0
    %2005 = vmatpush1.xpose.msra.mxu0 %v1899
    %2006 = vmatprep.subr.mxu0 0.0
    %2007 = vmatpush2.xpose.msra.mxu0 0.0
    %2008 = vmatprep.subr.mxu0 0.0
    %2009 = vmatpush2.xpose.msra.mxu0 0.0
    %2010 = vmatprep.subr.mxu0 0.0
    %2011 = vmatpush2.xpose.msra.mxu0 0.0
    %2012 = vmatprep.subr.mxu0 0.0
    %2013 = vmatpush2.xpose.msra.mxu0 0.0
    %2014 = vmatprep.subr.mxu0 0.0
    %2015 = vmatpush2.xpose.msra.mxu0 0.0
    %2016 = vmatprep.subr.mxu0 0.0
    %2017 = vmatpush2.xpose.msra.mxu0 0.0
    %2018 = vmatprep.subr.mxu0 0.0
    %2019 = vmatpush2.xpose.msra.mxu0 0.0
    %2020 = vmatprep.subr.mxu0 0.0
    %2021 = vmatpush2.xpose.msra.mxu0 0.0
    %2022 = vmatprep.subr.mxu0 0.0
    %2023 = vmatpush2.xpose.msra.mxu0 0.0
    %2024 = vmatprep.subr.mxu0 0.0
    %2025 = vmatpush2.xpose.msra.mxu0 0.0
    %2026 = vmatprep.subr.mxu0 0.0
    %2027 = vmatpush2.xpose.msra.mxu0 0.0
    %2028 = vmatprep.subr.mxu0 0.0
    %2029 = vmatpush2.xpose.msra.mxu0 0.0
    %2030 = vmatprep.subr.mxu0 0.0
    %2031 = vmatpush2.xpose.msra.mxu0 0.0
    %2032 = vmatprep.subr.mxu0 0.0
    %2033 = vmatpush2.xpose.msra.mxu0 0.0
    %2034 = vmatprep.subr.mxu0 0.0
    %2035 = vmatpush2.xpose.msra.mxu0 0.0
    %2036 = vmatprep.subr.mxu0 0.0
    %2037 = vmatpush2.xpose.msra.mxu0 0.0
    %2038 = vmatprep.mubr.f32.mxu0 0.0
    %2039 = vmatmul.mubr.f32.gmra.mxu0 %v1972
    %v2040 = vpop.f32.mrf.mxu0
    %v2041 = vadd.f32 0.0, %v2040
    %v2042 = vpop.f32.mrf.mxu0
    %2043 = vdwg.mxu0
    %v2044 = vmul.f32 %v1819, 0.35355338
    %v2045 = vmul.f32 %v1892, 0.35355338
    %v2046 = vmul.f32 %v1968, 0.35355338
    %v2047 = vmul.f32 %v2041, 0.35355338
    %v2048 = vsel %vm862, %v2044, -inf
    %v2049 = vsel %vm862, %v2045, -inf
    %v2050 = vsel %vm862, %v2046, -inf
    %v2051 = vsel %vm862, %v2047, -inf
    %v2052 = vsel %vm558, %v2048, -inf
    %2053 = vmax.xlane.f32.xlu0 %v2052
    %v2054 = vpop.xlane.xlu0 %2053
    %v2055 = vsel %vm558, %v2049, -inf
    %2056 = vmax.xlane.f32.xlu0 %v2055
    %v2057 = vpop.xlane.xlu0 %2056
    %v2058 = vsel %vm558, %v2050, -inf
    %2059 = vmax.xlane.f32.xlu0 %v2058
    %v2060 = vpop.xlane.xlu0 %2059
    %v2061 = vsel %vm558, %v2051, -inf
    %2062 = vmax.xlane.f32.xlu0 %v2061
    %v2063 = vpop.xlane.xlu0 %2062
    %v2064 = vsub.f32 %v2048, %v2054
    %v2065 = vsub.f32 %v2049, %v2057
    %v2066 = vsub.f32 %v2050, %v2060
    %v2067 = vsub.f32 %v2051, %v2063
    %v2068 = vmul.f32 %v2064, 1.442695
    %v2069 = vpow.pop %v2068
    %v2070 = vmul.f32 %v2065, 1.442695
    %v2071 = vpow.pop %v2070
    %v2072 = vmul.f32 %v2066, 1.442695
    %v2073 = vpow.pop %v2072
    %v2074 = vmul.f32 %v2067, 1.442695
    %v2075 = vpow.pop %v2074
    %v2076 = vsel %vm558, %v2069, 0.0
    %2077 = vadd.xlane.f32.xlu0 %v2076
    %v2078 = vpop.xlane.xlu0 %2077
    %v2079 = vsel %vm558, %v2071, 0.0
    %2080 = vadd.xlane.f32.xlu0 %v2079
    %v2081 = vpop.xlane.xlu0 %2080
    %v2082 = vsel %vm558, %v2073, 0.0
    %2083 = vadd.xlane.f32.xlu0 %v2082
    %v2084 = vpop.xlane.xlu0 %2083
    %v2085 = vsel %vm558, %v2075, 0.0
    %2086 = vadd.xlane.f32.xlu0 %v2085
    %v2087 = vpop.xlane.xlu0 %2086
    %v2088 = vrcp.pop %v2078
    %v2089 = vrcp.pop %v2081
    %v2090 = vrcp.pop %v2084
    %v2091 = vrcp.pop %v2087
    %v2092 = vmul.f32 %v2069, %v2088
    %v2093 = vmul.f32 %v2071, %v2089
    %v2094 = vmul.f32 %v2073, %v2090
    %v2095 = vmul.f32 %v2075, %v2091
    %v2097 = vsel %vm558, %v2092, 0
    %2099 = vmatprep.subr.mxu0 0.0
    %2100 = vmatpush1.msra.mxu0 0.0
    %2101 = vmatprep.subr.mxu0 0.0
    %2102 = vmatpush1.msra.mxu0 0.0
    %2103 = vmatprep.subr.mxu0 0.0
    %2104 = vmatpush1.msra.mxu0 0.0
    %2105 = vmatprep.subr.mxu0 0.0
    %2106 = vmatpush1.msra.mxu0 0.0
    %2107 = vmatprep.subr.mxu0 0.0
    %2108 = vmatpush1.msra.mxu0 0.0
    %2109 = vmatprep.subr.mxu0 0.0
    %2110 = vmatpush1.msra.mxu0 0.0
    %2111 = vmatprep.subr.mxu0 0.0
    %2112 = vmatpush1.msra.mxu0 0.0
    %2113 = vmatprep.subr.mxu0 0.0
    %2114 = vmatpush1.msra.mxu0 0.0
    %2115 = vmatprep.subr.mxu0 0.0
    %2116 = vmatpush1.msra.mxu0 0.0
    %2117 = vmatprep.subr.mxu0 0.0
    %2118 = vmatpush1.msra.mxu0 0.0
    %2119 = vmatprep.subr.mxu0 0.0
    %2120 = vmatpush1.msra.mxu0 0.0
    %2121 = vmatprep.subr.mxu0 0.0
    %2122 = vmatpush1.msra.mxu0 0.0
    %2123 = vmatprep.subr.mxu0 0.0
    %2124 = vmatpush1.msra.mxu0 0.0
    %2125 = vmatprep.subr.mxu0 0.0
    %2126 = vmatpush1.msra.mxu0 0.0
    %2127 = vmatprep.subr.mxu0 0.0
    %2128 = vmatpush1.msra.mxu0 0.0
    %2129 = vmatprep.subr.mxu0 0.0
    %2130 = vmatpush1.msra.mxu0 %v1744
    %2131 = vmatprep.subr.mxu0 0.0
    %2132 = vmatpush2.msra.mxu0 0.0
    %2133 = vmatprep.subr.mxu0 0.0
    %2134 = vmatpush2.msra.mxu0 0.0
    %2135 = vmatprep.subr.mxu0 0.0
    %2136 = vmatpush2.msra.mxu0 0.0
    %2137 = vmatprep.subr.mxu0 0.0
    %2138 = vmatpush2.msra.mxu0 0.0
    %2139 = vmatprep.subr.mxu0 0.0
    %2140 = vmatpush2.msra.mxu0 0.0
    %2141 = vmatprep.subr.mxu0 0.0
    %2142 = vmatpush2.msra.mxu0 0.0
    %2143 = vmatprep.subr.mxu0 0.0
    %2144 = vmatpush2.msra.mxu0 0.0
    %2145 = vmatprep.subr.mxu0 0.0
    %2146 = vmatpush2.msra.mxu0 0.0
    %2147 = vmatprep.subr.mxu0 0.0
    %2148 = vmatpush2.msra.mxu0 0.0
    %2149 = vmatprep.subr.mxu0 0.0
    %2150 = vmatpush2.msra.mxu0 0.0
    %2151 = vmatprep.subr.mxu0 0.0
    %2152 = vmatpush2.msra.mxu0 0.0
    %2153 = vmatprep.subr.mxu0 0.0
    %2154 = vmatpush2.msra.mxu0 0.0
    %2155 = vmatprep.subr.mxu0 0.0
    %2156 = vmatpush2.msra.mxu0 0.0
    %2157 = vmatprep.subr.mxu0 0.0
    %2158 = vmatpush2.msra.mxu0 0.0
    %2159 = vmatprep.subr.mxu0 0.0
    %2160 = vmatpush2.msra.mxu0 0.0
    %2161 = vmatprep.subr.mxu0 0.0
    %2162 = vmatpush2.msra.mxu0 0.0
    %2163 = vmatprep.mubr.f32.mxu0 0.0
    %2164 = vmatmul.mubr.f32.gmra.mxu0 %v2097
    %v2165 = vpop.f32.mrf.mxu0
    %v2166 = vadd.f32 0.0, %v2165
    %v2167 = vpop.f32.mrf.mxu0
    %2168 = vdwg.mxu0
    %v2170 = vsel %vm558, %v2093, 0
    %2172 = vmatprep.subr.mxu0 0.0
    %2173 = vmatpush1.msra.mxu0 0.0
    %2174 = vmatprep.subr.mxu0 0.0
    %2175 = vmatpush1.msra.mxu0 0.0
    %2176 = vmatprep.subr.mxu0 0.0
    %2177 = vmatpush1.msra.mxu0 0.0
    %2178 = vmatprep.subr.mxu0 0.0
    %2179 = vmatpush1.msra.mxu0 0.0
    %2180 = vmatprep.subr.mxu0 0.0
    %2181 = vmatpush1.msra.mxu0 0.0
    %2182 = vmatprep.subr.mxu0 0.0
    %2183 = vmatpush1.msra.mxu0 0.0
    %2184 = vmatprep.subr.mxu0 0.0
    %2185 = vmatpush1.msra.mxu0 0.0
    %2186 = vmatprep.subr.mxu0 0.0
    %2187 = vmatpush1.msra.mxu0 0.0
    %2188 = vmatprep.subr.mxu0 0.0
    %2189 = vmatpush1.msra.mxu0 0.0
    %2190 = vmatprep.subr.mxu0 0.0
    %2191 = vmatpush1.msra.mxu0 0.0
    %2192 = vmatprep.subr.mxu0 0.0
    %2193 = vmatpush1.msra.mxu0 0.0
    %2194 = vmatprep.subr.mxu0 0.0
    %2195 = vmatpush1.msra.mxu0 0.0
    %2196 = vmatprep.subr.mxu0 0.0
    %2197 = vmatpush1.msra.mxu0 0.0
    %2198 = vmatprep.subr.mxu0 0.0
    %2199 = vmatpush1.msra.mxu0 0.0
    %2200 = vmatprep.subr.mxu0 0.0
    %2201 = vmatpush1.msra.mxu0 0.0
    %2202 = vmatprep.subr.mxu0 0.0
    %2203 = vmatpush1.msra.mxu0 %v1744
    %2204 = vmatprep.subr.mxu0 0.0
    %2205 = vmatpush2.msra.mxu0 0.0
    %2206 = vmatprep.subr.mxu0 0.0
    %2207 = vmatpush2.msra.mxu0 0.0
    %2208 = vmatprep.subr.mxu0 0.0
    %2209 = vmatpush2.msra.mxu0 0.0
    %2210 = vmatprep.subr.mxu0 0.0
    %2211 = vmatpush2.msra.mxu0 0.0
    %2212 = vmatprep.subr.mxu0 0.0
    %2213 = vmatpush2.msra.mxu0 0.0
    %2214 = vmatprep.subr.mxu0 0.0
    %2215 = vmatpush2.msra.mxu0 0.0
    %2216 = vmatprep.subr.mxu0 0.0
    %2217 = vmatpush2.msra.mxu0 0.0
    %2218 = vmatprep.subr.mxu0 0.0
    %2219 = vmatpush2.msra.mxu0 0.0
    %2220 = vmatprep.subr.mxu0 0.0
    %2221 = vmatpush2.msra.mxu0 0.0
    %2222 = vmatprep.subr.mxu0 0.0
    %2223 = vmatpush2.msra.mxu0 0.0
    %2224 = vmatprep.subr.mxu0 0.0
    %2225 = vmatpush2.msra.mxu0 0.0
    %2226 = vmatprep.subr.mxu0 0.0
    %2227 = vmatpush2.msra.mxu0 0.0
    %2228 = vmatprep.subr.mxu0 0.0
    %2229 = vmatpush2.msra.mxu0 0.0
    %2230 = vmatprep.subr.mxu0 0.0
    %2231 = vmatpush2.msra.mxu0 0.0
    %2232 = vmatprep.subr.mxu0 0.0
    %2233 = vmatpush2.msra.mxu0 0.0
    %2234 = vmatprep.subr.mxu0 0.0
    %2235 = vmatpush2.msra.mxu0 0.0
    %2236 = vmatprep.mubr.f32.mxu0 0.0
    %2237 = vmatmul.mubr.f32.gmra.mxu0 %v2170
    %v2238 = vpop.f32.mrf.mxu0
    %v2239 = vadd.f32 0.0, %v2238
    %v2240 = vpop.f32.mrf.mxu0
    %2241 = vdwg.mxu0
    %v2243 = vsel %vm558, %v2094, 0
    %2245 = vmatprep.subr.mxu0 0.0
    %2246 = vmatpush1.msra.mxu0 0.0
    %2247 = vmatprep.subr.mxu0 0.0
    %2248 = vmatpush1.msra.mxu0 0.0
    %2249 = vmatprep.subr.mxu0 0.0
    %2250 = vmatpush1.msra.mxu0 0.0
    %2251 = vmatprep.subr.mxu0 0.0
    %2252 = vmatpush1.msra.mxu0 0.0
    %2253 = vmatprep.subr.mxu0 0.0
    %2254 = vmatpush1.msra.mxu0 0.0
    %2255 = vmatprep.subr.mxu0 0.0
    %2256 = vmatpush1.msra.mxu0 0.0
    %2257 = vmatprep.subr.mxu0 0.0
    %2258 = vmatpush1.msra.mxu0 0.0
    %2259 = vmatprep.subr.mxu0 0.0
    %2260 = vmatpush1.msra.mxu0 0.0
    %2261 = vmatprep.subr.mxu0 0.0
    %2262 = vmatpush1.msra.mxu0 0.0
    %2263 = vmatprep.subr.mxu0 0.0
    %2264 = vmatpush1.msra.mxu0 0.0
    %2265 = vmatprep.subr.mxu0 0.0
    %2266 = vmatpush1.msra.mxu0 0.0
    %2267 = vmatprep.subr.mxu0 0.0
    %2268 = vmatpush1.msra.mxu0 0.0
    %2269 = vmatprep.subr.mxu0 0.0
    %2270 = vmatpush1.msra.mxu0 0.0
    %2271 = vmatprep.subr.mxu0 0.0
    %2272 = vmatpush1.msra.mxu0 0.0
    %2273 = vmatprep.subr.mxu0 0.0
    %2274 = vmatpush1.msra.mxu0 0.0
    %2275 = vmatprep.subr.mxu0 0.0
    %2276 = vmatpush1.msra.mxu0 %v1745
    %2277 = vmatprep.subr.mxu0 0.0
    %2278 = vmatpush2.msra.mxu0 0.0
    %2279 = vmatprep.subr.mxu0 0.0
    %2280 = vmatpush2.msra.mxu0 0.0
    %2281 = vmatprep.subr.mxu0 0.0
    %2282 = vmatpush2.msra.mxu0 0.0
    %2283 = vmatprep.subr.mxu0 0.0
    %2284 = vmatpush2.msra.mxu0 0.0
    %2285 = vmatprep.subr.mxu0 0.0
    %2286 = vmatpush2.msra.mxu0 0.0
    %2287 = vmatprep.subr.mxu0 0.0
    %2288 = vmatpush2.msra.mxu0 0.0
    %2289 = vmatprep.subr.mxu0 0.0
    %2290 = vmatpush2.msra.mxu0 0.0
    %2291 = vmatprep.subr.mxu0 0.0
    %2292 = vmatpush2.msra.mxu0 0.0
    %2293 = vmatprep.subr.mxu0 0.0
    %2294 = vmatpush2.msra.mxu0 0.0
    %2295 = vmatprep.subr.mxu0 0.0
    %2296 = vmatpush2.msra.mxu0 0.0
    %2297 = vmatprep.subr.mxu0 0.0
    %2298 = vmatpush2.msra.mxu0 0.0
    %2299 = vmatprep.subr.mxu0 0.0
    %2300 = vmatpush2.msra.mxu0 0.0
    %2301 = vmatprep.subr.mxu0 0.0
    %2302 = vmatpush2.msra.mxu0 0.0
    %2303 = vmatprep.subr.mxu0 0.0
    %2304 = vmatpush2.msra.mxu0 0.0
    %2305 = vmatprep.subr.mxu0 0.0
    %2306 = vmatpush2.msra.mxu0 0.0
    %2307 = vmatprep.subr.mxu0 0.0
    %2308 = vmatpush2.msra.mxu0 0.0
    %2309 = vmatprep.mubr.f32.mxu0 0.0
    %2310 = vmatmul.mubr.f32.gmra.mxu0 %v2243
    %v2311 = vpop.f32.mrf.mxu0
    %v2312 = vadd.f32 0.0, %v2311
    %v2313 = vpop.f32.mrf.mxu0
    %2314 = vdwg.mxu0
    %v2316 = vsel %vm558, %v2095, 0
    %2318 = vmatprep.subr.mxu0 0.0
    %2319 = vmatpush1.msra.mxu0 0.0
    %2320 = vmatprep.subr.mxu0 0.0
    %2321 = vmatpush1.msra.mxu0 0.0
    %2322 = vmatprep.subr.mxu0 0.0
    %2323 = vmatpush1.msra.mxu0 0.0
    %2324 = vmatprep.subr.mxu0 0.0
    %2325 = vmatpush1.msra.mxu0 0.0
    %2326 = vmatprep.subr.mxu0 0.0
    %2327 = vmatpush1.msra.mxu0 0.0
    %2328 = vmatprep.subr.mxu0 0.0
    %2329 = vmatpush1.msra.mxu0 0.0
    %2330 = vmatprep.subr.mxu0 0.0
    %2331 = vmatpush1.msra.mxu0 0.0
    %2332 = vmatprep.subr.mxu0 0.0
    %2333 = vmatpush1.msra.mxu0 0.0
    %2334 = vmatprep.subr.mxu0 0.0
    %2335 = vmatpush1.msra.mxu0 0.0
    %2336 = vmatprep.subr.mxu0 0.0
    %2337 = vmatpush1.msra.mxu0 0.0
    %2338 = vmatprep.subr.mxu0 0.0
    %2339 = vmatpush1.msra.mxu0 0.0
    %2340 = vmatprep.subr.mxu0 0.0
    %2341 = vmatpush1.msra.mxu0 0.0
    %2342 = vmatprep.subr.mxu0 0.0
    %2343 = vmatpush1.msra.mxu0 0.0
    %2344 = vmatprep.subr.mxu0 0.0
    %2345 = vmatpush1.msra.mxu0 0.0
    %2346 = vmatprep.subr.mxu0 0.0
    %2347 = vmatpush1.msra.mxu0 0.0
    %2348 = vmatprep.subr.mxu0 0.0
    %2349 = vmatpush1.msra.mxu0 %v1745
    %2350 = vmatprep.subr.mxu0 0.0
    %2351 = vmatpush2.msra.mxu0 0.0
    %2352 = vmatprep.subr.mxu0 0.0
    %2353 = vmatpush2.msra.mxu0 0.0
    %2354 = vmatprep.subr.mxu0 0.0
    %2355 = vmatpush2.msra.mxu0 0.0
    %2356 = vmatprep.subr.mxu0 0.0
    %2357 = vmatpush2.msra.mxu0 0.0
    %2358 = vmatprep.subr.mxu0 0.0
    %2359 = vmatpush2.msra.mxu0 0.0
    %2360 = vmatprep.subr.mxu0 0.0
    %2361 = vmatpush2.msra.mxu0 0.0
    %2362 = vmatprep.subr.mxu0 0.0
    %2363 = vmatpush2.msra.mxu0 0.0
    %2364 = vmatprep.subr.mxu0 0.0
    %2365 = vmatpush2.msra.mxu0 0.0
    %2366 = vmatprep.subr.mxu0 0.0
    %2367 = vmatpush2.msra.mxu0 0.0
    %2368 = vmatprep.subr.mxu0 0.0
    %2369 = vmatpush2.msra.mxu0 0.0
    %2370 = vmatprep.subr.mxu0 0.0
    %2371 = vmatpush2.msra.mxu0 0.0
    %2372 = vmatprep.subr.mxu0 0.0
    %2373 = vmatpush2.msra.mxu0 0.0
    %2374 = vmatprep.subr.mxu0 0.0
    %2375 = vmatpush2.msra.mxu0 0.0
    %2376 = vmatprep.subr.mxu0 0.0
    %2377 = vmatpush2.msra.mxu0 0.0
    %2378 = vmatprep.subr.mxu0 0.0
    %2379 = vmatpush2.msra.mxu0 0.0
    %2380 = vmatprep.subr.mxu0 0.0
    %2381 = vmatpush2.msra.mxu0 0.0
    %2382 = vmatprep.mubr.f32.mxu0 0.0
    %2383 = vmatmul.mubr.f32.gmra.mxu0 %v2316
    %v2384 = vpop.f32.mrf.mxu0
    %v2385 = vadd.f32 0.0, %v2384
    %v2386 = vpop.f32.mrf.mxu0
    %2387 = vdwg.mxu0
    %v2388 = vcombine.low %v2166, %v2312
    %v2389 = vcombine.high %v2166, %v2312
    %v2391 = vunpack.c.l.s4 1983009808
    %v2392 = vunpack.c.0.s8 %v2391
    %v2393 = vlaneseq
    %v2394 = vshrl.u32 %v2393, 7
    %v2395 = vsub.s32 %v2392, %v2394
    %v2396 = vrot.slane %v2388, %v2395
    %v2398 = vunpack.c.l.s4 1983009808
    %v2399 = vunpack.c.0.s8 %v2398
    %v2400 = vlaneseq
    %v2401 = vshrl.u32 %v2400, 7
    %v2402 = vsub.s32 %v2399, %v2401
    %v2403 = vrot.slane %v2389, %v2402
    %v2404 = vcombine.low %v2239, %v2385
    %v2405 = vcombine.high %v2239, %v2385
    %v2407 = vunpack.c.l.s4 1983009808
    %v2408 = vunpack.c.0.s8 %v2407
    %v2409 = vlaneseq
    %v2410 = vshrl.u32 %v2409, 7
    %v2411 = vsub.s32 %v2408, %v2410
    %v2412 = vrot.slane %v2404, %v2411
    %v2414 = vunpack.c.l.s4 1983009808
    %v2415 = vunpack.c.0.s8 %v2414
    %v2416 = vlaneseq
    %v2417 = vshrl.u32 %v2416, 7
    %v2418 = vsub.s32 %v2415, %v2417
    %v2419 = vrot.slane %v2405, %v2418
    %v2420 = vcombine.low %v2396, %v2412
    %v2421 = vcombine.high %v2396, %v2412
    %v2423 = vunpack.c.l.s4 1934713408
    %v2424 = vunpack.c.0.s8 %v2423
    %v2425 = vlaneseq
    %v2426 = vshrl.u32 %v2425, 7
    %v2427 = vsub.s32 %v2424, %v2426
    %v2428 = vrot.slane %v2420, %v2427
    %v2430 = vunpack.c.l.s4 1934713408
    %v2431 = vunpack.c.0.s8 %v2430
    %v2432 = vlaneseq
    %v2433 = vshrl.u32 %v2432, 7
    %v2434 = vsub.s32 %v2431, %v2433
    %v2435 = vrot.slane %v2421, %v2434
    %v2436 = vcombine.low %v2403, %v2419
    %v2437 = vcombine.high %v2403, %v2419
    %v2439 = vunpack.c.l.s4 1934713408
    %v2440 = vunpack.c.0.s8 %v2439
    %v2441 = vlaneseq
    %v2442 = vshrl.u32 %v2441, 7
    %v2443 = vsub.s32 %v2440, %v2442
    %v2444 = vrot.slane %v2436, %v2443
    %v2446 = vunpack.c.l.s4 1934713408
    %v2447 = vunpack.c.0.s8 %v2446
    %v2448 = vlaneseq
    %v2449 = vshrl.u32 %v2448, 7
    %v2450 = vsub.s32 %v2447, %v2449
    %v2451 = vrot.slane %v2437, %v2450
    %v2452 = vcombine.high %v2428, 0.0
    %v2453 = vcombine.high %v2435, 0.0
    %v2454 = vcombine.high %v2444, 0.0
    %v2455 = vcombine.high %v2451, 0.0
    %v2456 = vcombine.low %v2428, %v2435
    %v2458 = vunpack.c.l.s4 1983009808
    %v2459 = vunpack.c.0.s8 %v2458
    %v2460 = vlaneseq
    %v2461 = vshrl.u32 %v2460, 7
    %v2462 = vsub.s32 %v2459, %v2461
    %v2463 = vrot.slane %v2456, %v2462
    %v2464 = vcombine.low %v2452, %v2453
    %v2466 = vunpack.c.l.s4 1983009808
    %v2467 = vunpack.c.0.s8 %v2466
    %v2468 = vlaneseq
    %v2469 = vshrl.u32 %v2468, 7
    %v2470 = vsub.s32 %v2467, %v2469
    %v2471 = vrot.slane %v2464, %v2470
    %v2472 = vcombine.low %v2444, %v2451
    %v2474 = vunpack.c.l.s4 1983009808
    %v2475 = vunpack.c.0.s8 %v2474
    %v2476 = vlaneseq
    %v2477 = vshrl.u32 %v2476, 7
    %v2478 = vsub.s32 %v2475, %v2477
    %v2479 = vrot.slane %v2472, %v2478
    %v2480 = vcombine.low %v2454, %v2455
    %v2482 = vunpack.c.l.s4 1983009808
    %v2483 = vunpack.c.0.s8 %v2482
    %v2484 = vlaneseq
    %v2485 = vshrl.u32 %v2484, 7
    %v2486 = vsub.s32 %v2483, %v2485
    %v2487 = vrot.slane %v2480, %v2486
    %v2488 = vcombine.low %v2463, %v2471
    %v2489 = vcombine.high %v2463, %v2471
    %v2491 = vunpack.c.l.s4 1934713408
    %v2492 = vunpack.c.0.s8 %v2491
    %v2493 = vlaneseq
    %v2494 = vshrl.u32 %v2493, 7
    %v2495 = vsub.s32 %v2492, %v2494
    %v2496 = vrot.slane %v2488, %v2495
    %v2498 = vunpack.c.l.s4 1934713408
    %v2499 = vunpack.c.0.s8 %v2498
    %v2500 = vlaneseq
    %v2501 = vshrl.u32 %v2500, 7
    %v2502 = vsub.s32 %v2499, %v2501
    %v2503 = vrot.slane %v2489, %v2502
    %v2504 = vcombine.low %v2479, %v2487
    %v2505 = vcombine.high %v2479, %v2487
    %v2507 = vunpack.c.l.s4 1934713408
    %v2508 = vunpack.c.0.s8 %v2507
    %v2509 = vlaneseq
    %v2510 = vshrl.u32 %v2509, 7
    %v2511 = vsub.s32 %v2508, %v2510
    %v2512 = vrot.slane %v2504, %v2511
    %v2514 = vunpack.c.l.s4 1934713408
    %v2515 = vunpack.c.0.s8 %v2514
    %v2516 = vlaneseq
    %v2517 = vshrl.u32 %v2516, 7
    %v2518 = vsub.s32 %v2515, %v2517
    %v2519 = vrot.slane %v2505, %v2518
    %v2520 = vcombine.low %v2496, %v2512
    %v2521 = vcombine.high %v2496, %v2512
    %v2522 = vcombine.low %v2503, %v2519
    %v2523 = vcombine.high %v2503, %v2519
    %2525 = vrot.lane.b32.xlu0 %v2521, 8
    %v2526 = vpop.permute.xlu0 %2525
    %2529 = vrot.lane.b32.xlu0 %v2522, 16
    %v2530 = vpop.permute.xlu0 %2529
    %2533 = vrot.lane.b32.xlu0 %v2523, 24
    %v2534 = vpop.permute.xlu0 %2533
    %v2536 = vsel %vm558, %v2520, %v2526
    %v2537 = vsel %vm1352, %v2536, %v2530
    %v2538 = vsel %vm1354, %v2537, %v2534
    %v2539 = vadd.f32 %v1355, %v30
    %v2540 = vadd.f32 %v2538, %v31
    %v2541 = vld [vmem:[%s3] sm:$0x1]
    %v2542 = vld [vmem:[%s4] sm:$0x1]
    %v2543 = vsel %vm34, %v2539, 0.0
    %2544 = vadd.xlane.f32.xlu0 %v2543
    %v2545 = vpop.xlane.xlu0 %2544
    %v2546 = vsel %vm34, %v2540, 0.0
    %2547 = vadd.xlane.f32.xlu0 %v2546
    %v2548 = vpop.xlane.xlu0 %2547
    %v2549 = vmul.f32 %v2545, %v41
    %v2550 = vmul.f32 %v2548, %v41
    %v2551 = vsub.f32 %v2539, %v2549
    %v2552 = vsub.f32 %v2540, %v2550
    %v2553 = vmul.f32 %v2551, %v2551
    %v2554 = vmul.f32 %v2552, %v2552
    %v2555 = vsel %vm34, %v2553, 0.0
    %2556 = vadd.xlane.f32.xlu0 %v2555
    %v2557 = vpop.xlane.xlu0 %2556
    %v2558 = vsel %vm34, %v2554, 0.0
    %2559 = vadd.xlane.f32.xlu0 %v2558
    %v2560 = vpop.xlane.xlu0 %2559
    %v2561 = vmul.f32 %v2557, %v41
    %v2562 = vmul.f32 %v2560, %v41
    %v2563 = vadd.f32 %v2561, 1e-05
    %v2564 = vadd.f32 %v2562, 1e-05
    %v2565 = vrsqrt.pop %v2563
    %v2566 = vrsqrt.pop %v2564
    %v2567 = vmul.f32 %v2551, %v2565
    %v2568 = vmul.f32 %v2552, %v2566
    %v2570 = vlaneseq
    %v2571 = vshrl.u32 %v2570, 7
    %v2572 = vsub.s32 0, %v2571
    %v2573 = vrot.slane %v2541, %v2572
    %v2575 = vmul.f32 %v2567, %v2573
    %v2576 = vmul.f32 %v2568, %v2573
    %v2578 = vlaneseq
    %v2579 = vshrl.u32 %v2578, 7
    %v2580 = vsub.s32 0, %v2579
    %v2581 = vrot.slane %v2542, %v2580
    %v2583 = vadd.f32 %v2575, %v2581
    %v2584 = vadd.f32 %v2576, %v2581
    %v2585 = vld [vmem:[%s6] sm:$0xff]
    %v2586 = vld [vmem:[%s6 + $0x8] sm:$0xff]
    %v2587 = vld [vmem:[%s6 + $0x10] sm:$0xff]
    %v2588 = vld [vmem:[%s6 + $0x18] sm:$0xff]
    %v2589 = vld [vmem:[%s6 + $0x20] sm:$0xff]
    %v2590 = vld [vmem:[%s6 + $0x28] sm:$0xff]
    %v2591 = vld [vmem:[%s6 + $0x30] sm:$0xff]
    %v2592 = vld [vmem:[%s6 + $0x38] sm:$0xff]
    %v2594 = vsel %vm34, %v2583, 0
    %v2597 = vsel %vm34, %v2584, 0
    %2599 = vmatprep.subr.mxu0 0.0
    %2600 = vmatpush1.msra.mxu0 0.0
    %2601 = vmatprep.subr.mxu0 0.0
    %2602 = vmatpush1.msra.mxu0 0.0
    %2603 = vmatprep.subr.mxu0 0.0
    %2604 = vmatpush1.msra.mxu0 0.0
    %2605 = vmatprep.subr.mxu0 0.0
    %2606 = vmatpush1.msra.mxu0 0.0
    %2607 = vmatprep.subr.mxu0 0.0
    %2608 = vmatpush1.msra.mxu0 0.0
    %2609 = vmatprep.subr.mxu0 0.0
    %2610 = vmatpush1.msra.mxu0 0.0
    %2611 = vmatprep.subr.mxu0 0.0
    %2612 = vmatpush1.msra.mxu0 0.0
    %2613 = vmatprep.subr.mxu0 0.0
    %2614 = vmatpush1.msra.mxu0 0.0
    %2615 = vmatprep.subr.mxu0 0.0
    %2616 = vmatpush1.msra.mxu0 0.0
    %2617 = vmatprep.subr.mxu0 0.0
    %2618 = vmatpush1.msra.mxu0 0.0
    %2619 = vmatprep.subr.mxu0 0.0
    %2620 = vmatpush1.msra.mxu0 0.0
    %2621 = vmatprep.subr.mxu0 0.0
    %2622 = vmatpush1.msra.mxu0 0.0
    %2623 = vmatprep.subr.mxu0 %v2592
    %2624 = vmatpush1.msra.mxu0 %v2591
    %2625 = vmatprep.subr.mxu0 %v2590
    %2626 = vmatpush1.msra.mxu0 %v2589
    %2627 = vmatprep.subr.mxu0 %v2588
    %2628 = vmatpush1.msra.mxu0 %v2587
    %2629 = vmatprep.subr.mxu0 %v2586
    %2630 = vmatpush1.msra.mxu0 %v2585
    %2631 = vmatprep.subr.mxu0 0.0
    %2632 = vmatpush2.msra.mxu0 0.0
    %2633 = vmatprep.subr.mxu0 0.0
    %2634 = vmatpush2.msra.mxu0 0.0
    %2635 = vmatprep.subr.mxu0 0.0
    %2636 = vmatpush2.msra.mxu0 0.0
    %2637 = vmatprep.subr.mxu0 0.0
    %2638 = vmatpush2.msra.mxu0 0.0
    %2639 = vmatprep.subr.mxu0 0.0
    %2640 = vmatpush2.msra.mxu0 0.0
    %2641 = vmatprep.subr.mxu0 0.0
    %2642 = vmatpush2.msra.mxu0 0.0
    %2643 = vmatprep.subr.mxu0 0.0
    %2644 = vmatpush2.msra.mxu0 0.0
    %2645 = vmatprep.subr.mxu0 0.0
    %2646 = vmatpush2.msra.mxu0 0.0
    %2647 = vmatprep.subr.mxu0 0.0
    %2648 = vmatpush2.msra.mxu0 0.0
    %2649 = vmatprep.subr.mxu0 0.0
    %2650 = vmatpush2.msra.mxu0 0.0
    %2651 = vmatprep.subr.mxu0 0.0
    %2652 = vmatpush2.msra.mxu0 0.0
    %2653 = vmatprep.subr.mxu0 0.0
    %2654 = vmatpush2.msra.mxu0 0.0
    %2655 = vmatprep.subr.mxu0 0.0
    %2656 = vmatpush2.msra.mxu0 0.0
    %2657 = vmatprep.subr.mxu0 0.0
    %2658 = vmatpush2.msra.mxu0 0.0
    %2659 = vmatprep.subr.mxu0 0.0
    %2660 = vmatpush2.msra.mxu0 0.0
    %2661 = vmatprep.subr.mxu0 0.0
    %2662 = vmatpush2.msra.mxu0 0.0
    %2663 = vmatprep.mubr.f32.mxu0 0.0
    %2664 = vmatmul.mubr.f32.gmra.mxu0 %v2594
    %v2665 = vpop.f32.mrf.mxu0
    %v2666 = vadd.f32 0.0, %v2665
    %v2667 = vpop.f32.mrf.mxu0
    %v2668 = vadd.f32 0.0, %v2667
    %2669 = vmatprep.mubr.f32.mxu0 0.0
    %2670 = vmatmul.mubr.f32.gmra.mxu0 %v2597
    %v2671 = vpop.f32.mrf.mxu0
    %v2672 = vadd.f32 0.0, %v2671
    %v2673 = vpop.f32.mrf.mxu0
    %v2674 = vadd.f32 0.0, %v2673
    %2675 = vdwg.mxu0
    %v2676 = vxor.u32 %v2666, 2147483648
    %v2677 = vxor.u32 %v2672, 2147483648
    %v2678 = vmul.f32 %v2676, 1.442695
    %v2679 = vpow.pop %v2678
    %v2680 = vmul.f32 %v2677, 1.442695
    %v2681 = vpow.pop %v2680
    %v2682 = vadd.f32 %v2679, 1.0
    %v2683 = vadd.f32 %v2681, 1.0
    %v2684 = vrcp.pop %v2682
    %v2685 = vmul.f32 1.0, %v2684
    %v2686 = vrcp.pop %v2683
    %v2687 = vmul.f32 1.0, %v2686
    %v2688 = vmul.f32 %v2666, %v2685
    %v2689 = vmul.f32 %v2672, %v2687
    %v2690 = vmul.f32 %v2688, %v2668
    %v2691 = vmul.f32 %v2689, %v2674
    %v2692 = vld [vmem:[%s7] sm:$0xff]
    %v2693 = vld [vmem:[%s7 + $0x8] sm:$0xff]
    %v2694 = vld [vmem:[%s7 + $0x10] sm:$0xff]
    %v2695 = vld [vmem:[%s7 + $0x18] sm:$0xff]
    %v2696 = vld [vmem:[%s7 + $0x20] sm:$0xff]
    %v2697 = vld [vmem:[%s7 + $0x28] sm:$0xff]
    %v2698 = vld [vmem:[%s7 + $0x30] sm:$0xff]
    %v2699 = vld [vmem:[%s7 + $0x38] sm:$0xff]
    %v2700 = vld [vmem:[%s7 + $0x40] sm:$0xff]
    %v2701 = vld [vmem:[%s7 + $0x48] sm:$0xff]
    %v2702 = vld [vmem:[%s7 + $0x50] sm:$0xff]
    %v2703 = vld [vmem:[%s7 + $0x58] sm:$0xff]
    %v2704 = vld [vmem:[%s7 + $0x60] sm:$0xff]
    %v2705 = vld [vmem:[%s7 + $0x68] sm:$0xff]
    %v2706 = vld [vmem:[%s7 + $0x70] sm:$0xff]
    %v2707 = vld [vmem:[%s7 + $0x78] sm:$0xff]
    %2708 = vmatprep.subr.mxu0 0.0
    %2709 = vmatpush1.msra.mxu0 %v2707
    %2710 = vmatprep.subr.mxu0 0.0
    %2711 = vmatpush1.msra.mxu0 %v2706
    %2712 = vmatprep.subr.mxu0 0.0
    %2713 = vmatpush1.msra.mxu0 %v2705
    %2714 = vmatprep.subr.mxu0 0.0
    %2715 = vmatpush1.msra.mxu0 %v2704
    %2716 = vmatprep.subr.mxu0 0.0
    %2717 = vmatpush1.msra.mxu0 %v2703
    %2718 = vmatprep.subr.mxu0 0.0
    %2719 = vmatpush1.msra.mxu0 %v2702
    %2720 = vmatprep.subr.mxu0 0.0
    %2721 = vmatpush1.msra.mxu0 %v2701
    %2722 = vmatprep.subr.mxu0 0.0
    %2723 = vmatpush1.msra.mxu0 %v2700
    %2724 = vmatprep.subr.mxu0 0.0
    %2725 = vmatpush1.msra.mxu0 %v2699
    %2726 = vmatprep.subr.mxu0 0.0
    %2727 = vmatpush1.msra.mxu0 %v2698
    %2728 = vmatprep.subr.mxu0 0.0
    %2729 = vmatpush1.msra.mxu0 %v2697
    %2730 = vmatprep.subr.mxu0 0.0
    %2731 = vmatpush1.msra.mxu0 %v2696
    %2732 = vmatprep.subr.mxu0 0.0
    %2733 = vmatpush1.msra.mxu0 %v2695
    %2734 = vmatprep.subr.mxu0 0.0
    %2735 = vmatpush1.msra.mxu0 %v2694
    %2736 = vmatprep.subr.mxu0 0.0
    %2737 = vmatpush1.msra.mxu0 %v2693
    %2738 = vmatprep.subr.mxu0 0.0
    %2739 = vmatpush1.msra.mxu0 %v2692
    %2740 = vmatprep.subr.mxu0 0.0
    %2741 = vmatpush2.msra.mxu0 0.0
    %2742 = vmatprep.subr.mxu0 0.0
    %2743 = vmatpush2.msra.mxu0 0.0
    %2744 = vmatprep.subr.mxu0 0.0
    %2745 = vmatpush2.msra.mxu0 0.0
    %2746 = vmatprep.subr.mxu0 0.0
    %2747 = vmatpush2.msra.mxu0 0.0
    %2748 = vmatprep.subr.mxu0 0.0
    %2749 = vmatpush2.msra.mxu0 0.0
    %2750 = vmatprep.subr.mxu0 0.0
    %2751 = vmatpush2.msra.mxu0 0.0
    %2752 = vmatprep.subr.mxu0 0.0
    %2753 = vmatpush2.msra.mxu0 0.0
    %2754 = vmatprep.subr.mxu0 0.0
    %2755 = vmatpush2.msra.mxu0 0.0
    %2756 = vmatprep.subr.mxu0 0.0
    %2757 = vmatpush2.msra.mxu0 0.0
    %2758 = vmatprep.subr.mxu0 0.0
    %2759 = vmatpush2.msra.mxu0 0.0
    %2760 = vmatprep.subr.mxu0 0.0
    %2761 = vmatpush2.msra.mxu0 0.0
    %2762 = vmatprep.subr.mxu0 0.0
    %2763 = vmatpush2.msra.mxu0 0.0
    %2764 = vmatprep.subr.mxu0 0.0
    %2765 = vmatpush2.msra.mxu0 0.0
    %2766 = vmatprep.subr.mxu0 0.0
    %2767 = vmatpush2.msra.mxu0 0.0
    %2768 = vmatprep.subr.mxu0 0.0
    %2769 = vmatpush2.msra.mxu0 0.0
    %2770 = vmatprep.subr.mxu0 0.0
    %2771 = vmatpush2.msra.mxu0 0.0
    %2772 = vmatprep.mubr.f32.mxu0 0.0
    %2773 = vmatmul.mubr.f32.gmra.mxu0 %v2690
    %v2774 = vpop.f32.mrf.mxu0
    %v2775 = vadd.f32 %v2539, %v2774
    %v2776 = vpop.f32.mrf.mxu0
    %2777 = vmatprep.mubr.f32.mxu0 0.0
    %2778 = vmatmul.mubr.f32.gmra.mxu0 %v2691
    %v2779 = vpop.f32.mrf.mxu0
    %v2780 = vadd.f32 %v2540, %v2779
    %v2781 = vpop.f32.mrf.mxu0
    %2782 = vdwg.mxu0
    %2783 = vst.msk [vmem:[#allocation2] sm:$0xff] %vm34, %v2775
    %2784 = vst.msk [vmem:[#allocation2 + $0x8] sm:$0xff] %vm34, %v2780
    // Predicated region
    $region34: #{tpu_custom_call.1} parent=1 // pred_check
      _
    $region35: #{tpu_custom_call.1} parent=1 // pred_check_branch
      %2786 = sbr.rel (0) target = $region37
    $region36: #{tpu_custom_call.1} parent=1 // pred_region
      %s2788 = ssub.s32 256, 256
      %2789 = vsyncadd [#allocation3], %s2788
      %s2790 = sshll.u32 [#allocation2], 4
      %s2791 = int_to_ptr.vmem [resolvable:$true] %s2790
      %2796 = dma.vmem_to_hbm [thread:$0]  %s2791, 256, %s8, [#allocation3], 128, 128, 8
    $region37: #{tpu_custom_call.1} parent=1 // pred_fallthru
      _
    // Predicated region
    $region38: #{tpu_custom_call.1} parent=1 // pred_check
      _
    $region39: #{tpu_custom_call.1} parent=1 // pred_check_branch
      %2798 = sbr.rel (0) target = $region41
    $region40: #{tpu_custom_call.1} parent=1 // pred_region
      %2799 = dma.done [#allocation3], 256
    $region41: #{tpu_custom_call.1} parent=1 // pred_fallthru
      _
    %2800 = vsyncpa [#allocation3], 1

</llo_original>
